<compile_context>
chip_gen: v5e
topology: v5e:2x2
jax: 0.10.0
libtpu: 0.0.40
codegen_flags: <defaults>
</compile_context>

<pallas_src>
from functools import partial

import jax
import jax.numpy as jnp
from jax.experimental import pallas as pl
from jax.experimental.pallas import tpu as pltpu

# Module hyper-parameters (match CovarianceLossv2 defaults).
LA_R = 0.01
LA_MU = 0.01
R_INI = 1.0
R_EPS_WEIGHT = 1e-8


def _cov_update_kernel(z1_ref, z2_ref, mu1_ref, r1_ref, mu2_ref, r2_ref,
                       new_mu1_ref, new_r1_ref, new_mu2_ref, new_r2_ref,
                       s1_mat, s1_vec, s2_mat, s2_vec,
                       *, n, tn, la_mu, la_r, use_bf16):
    """Fused two-view EMA covariance update, streaming over the batch axis.

    Grid = (ceil(N/TN),).  The partial final tile (when TN does not divide N)
    is masked in-kernel, so zero-padding in HBM is never needed.
    """
    k = pl.program_id(0)
    nk = pl.num_programs(0)

    @pl.when(k == 0)
    def _init():
        s1_mat[...] = jnp.zeros_like(s1_mat)
        s1_vec[...] = jnp.zeros_like(s1_vec)
        s2_mat[...] = jnp.zeros_like(s2_mat)
        s2_vec[...] = jnp.zeros_like(s2_vec)

    z1 = z1_ref[...]                                      # (TN, D) f32 tile
    z2 = z2_ref[...]

    if n % tn != 0:
        # Ragged final tile: rows past N are undefined (partial block); zero
        # them before they touch the accumulators.  jnp.where selects, so any
        # garbage (even NaN) in the masked rows is harmless.
        row = jax.lax.broadcasted_iota(jnp.int32, (tn, 1), 0)
        valid = (row + k * tn) < n
        z1 = jnp.where(valid, z1, 0.0)
        z2 = jnp.where(valid, z2, 0.0)

    zz1 = z1.astype(jnp.bfloat16) if use_bf16 else z1
    zz2 = z2.astype(jnp.bfloat16) if use_bf16 else z2

    # Uncentered second moments on the MXU, contracting over the batch tile.
    # NOTE: contracting lhs dim 0 may lower with a per-tile transpose; that
    # XLU push shares the vector-extended issue slots with vmatmul, but at
    # D=128 its cost is ~1/(2D) of the matmul work.
    dn = (((0,), (0,)), ((), ()))                         # z.T @ z
    s1_mat[...] += jax.lax.dot_general(zz1, zz1, dimension_numbers=dn,
                                       preferred_element_type=jnp.float32)
    s2_mat[...] += jax.lax.dot_general(zz2, zz2, dimension_numbers=dn,
                                       preferred_element_type=jnp.float32)
    # Column sums (cheap sublane reductions).
    s1_vec[...] += jnp.sum(z1, axis=0, keepdims=True)
    s2_vec[...] += jnp.sum(z2, axis=0, keepdims=True)

    @pl.when(k == nk - 1)
    def _finalize():
        def finalize_view(s_mat, s_vec, mu_ref, r_ref, new_mu_ref, new_r_ref):
            d = new_r_ref.shape[0]
            m = s_vec[...] * (1.0 / n)                    # (1, D) batch mean
            new_mu = la_mu * mu_ref[...] + (1.0 - la_mu) * m
            new_mu_ref[...] = new_mu

            # z_hat.T@z_hat = S - N*outer(m,m) + N*outer(m-new_mu, m-new_mu)
            w = m - new_mu
            m_rows = jnp.broadcast_to(m, (d, d))          # [i, j] = m_j
            w_rows = jnp.broadcast_to(w, (d, d))          # [i, j] = w_j
            centered = s_mat[...] + float(n) * (w_rows.T * w_rows
                                                - m_rows.T * m_rows)
            # Fold (1/N) and (1 - la_R) into one scale; single DxD VPU pass.
            new_r_ref[...] = la_r * r_ref[...] + ((1.0 - la_r) / n) * centered

        finalize_view(s1_mat, s1_vec, mu1_ref, r1_ref, new_mu1_ref, new_r1_ref)
        finalize_view(s2_mat, s2_vec, mu2_ref, r2_ref, new_mu2_ref, new_r2_ref)


def cov_update_fused(z1, z2, mu1, R1, mu2, R2, *,
                     la_mu=LA_MU, la_r=LA_R,
                     batch_tile=None, use_bf16_matmul=False):
    """One pallas_call updating both views.

    Returns (new_mu1, new_R1, new_mu2, new_R2), all float32.
    """
    N, D = z1.shape
    assert z2.shape == (N, D)

    def f32(x):
        x = jnp.asarray(x)
        return x if x.dtype == jnp.float32 else x.astype(jnp.float32)

    z1 = f32(z1)
    z2 = f32(z2)
    mu1_2d = f32(mu1).reshape(1, D)
    mu2_2d = f32(mu2).reshape(1, D)
    R1 = f32(R1)
    R2 = f32(R2)

    def round8(x):
        return ((x + 7) // 8) * 8

    # Batch (MXU contraction) tile.  Big tiles amortize the ~0.35 us/step grid
    # overhead; keep block start within the array (partial final tile is
    # masked in-kernel).
    max_tn = (N // 8) * 8 if N >= 8 else N
    if batch_tile is None:
        batch_tile = min(round8(N), 2048)
    tn = int(max(1, min(round8(int(batch_tile)), max_tn)))
    nk = pl.cdiv(N, tn)

    kernel = partial(_cov_update_kernel, n=N, tn=tn, la_mu=la_mu, la_r=la_r,
                     use_bf16=use_bf16_matmul)

    # VMEM budget: 3 resident DxD blocks per view (R-in, new_R, S scratch) +
    # double-buffered z tiles for both views, plus headroom.  Cap below v7x's
    # 64 MiB physical VMEM.
    est = 4 * (6 * D * D + 4 * tn * D + 8 * D) + (2 << 20)
    vmem_limit = int(min(max(est, 16 * 1024 * 1024), 48 * 1024 * 1024))

    cost = pl.CostEstimate(
        flops=2 * (2 * N * D * D) + 16 * D * D,
        transcendentals=0,
        bytes_accessed=4 * (2 * N * D + 4 * D * D + 8 * D),
    )

    new_mu1, new_R1, new_mu2, new_R2 = pl.pallas_call(
        kernel,
        out_shape=(
            jax.ShapeDtypeStruct((1, D), jnp.float32),
            jax.ShapeDtypeStruct((D, D), jnp.float32),
            jax.ShapeDtypeStruct((1, D), jnp.float32),
            jax.ShapeDtypeStruct((D, D), jnp.float32),
        ),
        grid=(nk,),
        in_specs=[
            pl.BlockSpec((tn, D), lambda k: (k, 0)),   # z1: streamed/pipelined
            pl.BlockSpec((tn, D), lambda k: (k, 0)),   # z2: streamed/pipelined
            pl.BlockSpec((1, D), lambda k: (0, 0)),    # mu1: resident
            pl.BlockSpec((D, D), lambda k: (0, 0)),    # R1: resident
            pl.BlockSpec((1, D), lambda k: (0, 0)),    # mu2: resident
            pl.BlockSpec((D, D), lambda k: (0, 0)),    # R2: resident
        ],
        out_specs=(
            pl.BlockSpec((1, D), lambda k: (0, 0)),
            pl.BlockSpec((D, D), lambda k: (0, 0)),
            pl.BlockSpec((1, D), lambda k: (0, 0)),
            pl.BlockSpec((D, D), lambda k: (0, 0)),
        ),
        scratch_shapes=[
            pltpu.VMEM((D, D), jnp.float32),   # S1 (uncentered 2nd moment)
            pltpu.VMEM((1, D), jnp.float32),   # column-sum view 1
            pltpu.VMEM((D, D), jnp.float32),   # S2
            pltpu.VMEM((1, D), jnp.float32),   # column-sum view 2
        ],
        # EMA state update in-place when the caller donates mu/R.
        input_output_aliases={2: 0, 3: 1, 4: 2, 5: 3},
        compiler_params=pltpu.CompilerParams(
            dimension_semantics=("arbitrary",),
            vmem_limit_bytes=vmem_limit,
        ),
        cost_estimate=cost,
    )(z1, z2, mu1_2d, R1, mu2_2d, R2)

    return new_mu1.reshape(D), new_R1, new_mu2.reshape(D), new_R2


def covariance_loss_v2(z1, z2, mu1, R1, mu2, R2, *,
                       r_eps_weight=R_EPS_WEIGHT, **kwargs):
    """Forward pass of CovarianceLossv2.

    Returns (loss, (new_mu1, new_R1), (new_mu2, new_R2)).
    """
    _, D = z1.shape
    new_mu1, new_R1, new_mu2, new_R2 = cov_update_fused(
        z1, z2, mu1, R1, mu2, R2, **kwargs)
    # TODO(synk): logdet requires an LU/Cholesky factorization — no clean
    # Pallas TPU primitive, so it runs in plain JAX on the small (D, D) results.
    eps = r_eps_weight * jnp.eye(D, dtype=new_R1.dtype)
    _, ld1 = jnp.linalg.slogdet(new_R1 + eps)
    _, ld2 = jnp.linalg.slogdet(new_R2 + eps)
    cov_loss = -(ld1 + ld2) / D
    return cov_loss, (new_mu1, new_R1), (new_mu2, new_R2)


def _reference(z1, z2, mu1, R1, mu2, R2):
    """Pure-JAX reference mirroring the PyTorch forward (sanity check)."""
    N, D = z1.shape
    new_mu1 = LA_MU * mu1 + (1 - LA_MU) * jnp.mean(z1, 0)
    new_mu2 = LA_MU * mu2 + (1 - LA_MU) * jnp.mean(z2, 0)
    z1h, z2h = z1 - new_mu1[None, :], z2 - new_mu2[None, :]
    new_R1 = LA_R * R1 + (1 - LA_R) * (z1h.T @ z1h) / N
    new_R2 = LA_R * R2 + (1 - LA_R) * (z2h.T @ z2h) / N
    eps = R_EPS_WEIGHT * jnp.eye(D, dtype=jnp.float32)
    _, ld1 = jnp.linalg.slogdet(new_R1 + eps)
    _, ld2 = jnp.linalg.slogdet(new_R2 + eps)
    loss = -(ld1 + ld2) / D
    return loss, (new_mu1, new_R1), (new_mu2, new_R2)


if __name__ == "__main__":
    # Small shapes consistent with the module: projector '4096-4096-128' -> D=128.
    # N=28 is deliberately not a multiple of 8 / the batch tile to exercise the
    # in-kernel ragged-tile masking.
    N, D = 28, 128

    key = jax.random.PRNGKey(0)
    k1, k2 = jax.random.split(key)
    z1 = jax.random.normal(k1, (N, D), dtype=jnp.float32)
    z2 = jax.random.normal(k2, (N, D), dtype=jnp.float32)

    # Buffer init matching __init__ (R = R_ini * I, mu = 0).
    mu1 = jnp.zeros((D,), dtype=jnp.float32)
    mu2 = jnp.zeros((D,), dtype=jnp.float32)
    R1 = R_INI * jnp.eye(D, dtype=jnp.float32)
    R2 = R_INI * jnp.eye(D, dtype=jnp.float32)

    # Reference first (uses the original state buffers).
    ref_loss, (rm1, rR1), (rm2, rR2) = _reference(z1, z2, mu1, R1, mu2, R2)
    ref_loss = jax.block_until_ready(ref_loss)

    # batch_tile=8 -> 4 reduction steps with a masked partial last tile,
    # exercising both the streaming accumulator and the ragged-N path.
    loss, (nm1, nR1), (nm2, nR2) = covariance_loss_v2(
        z1, z2, mu1, R1, mu2, R2, batch_tile=8)
    loss = jax.block_until_ready(loss)

    # Default (large) batch tile: whole batch in one grid step, still masked.
    loss_d, (nm1_d, nR1_d), (nm2_d, nR2_d) = covariance_loss_v2(
        z1, z2, mu1, R1, mu2, R2)
    loss_d = jax.block_until_ready(loss_d)

    assert jnp.allclose(nm1, rm1, atol=1e-5, rtol=1e-5)
    assert jnp.allclose(nm2, rm2, atol=1e-5, rtol=1e-5)
    assert jnp.allclose(nR1, rR1, atol=1e-4, rtol=1e-4)
    assert jnp.allclose(nR2, rR2, atol=1e-4, rtol=1e-4)
    assert jnp.allclose(loss, ref_loss, atol=1e-4, rtol=1e-4), (loss, ref_loss)

    assert jnp.allclose(nm1_d, rm1, atol=1e-5, rtol=1e-5)
    assert jnp.allclose(nR1_d, rR1, atol=1e-4, rtol=1e-4)
    assert jnp.allclose(nR2_d, rR2, atol=1e-4, rtol=1e-4)
    assert jnp.allclose(loss_d, ref_loss, atol=1e-4, rtol=1e-4), (loss_d, ref_loss)

    print("KERNEL_OK")
</pallas_src>

<mosaic_0001>
module attributes {stable_mosaic.version = 11 : i64} {
  func.func @_cov_update_kernel(%arg0: i32, %arg1: memref<8x128xf32, #tpu.memory_space<vmem>>, %arg2: memref<8x128xf32, #tpu.memory_space<vmem>>, %arg3: memref<1x128xf32, #tpu.memory_space<vmem>>, %arg4: memref<128x128xf32, #tpu.memory_space<vmem>>, %arg5: memref<1x128xf32, #tpu.memory_space<vmem>>, %arg6: memref<128x128xf32, #tpu.memory_space<vmem>>, %arg7: memref<1x128xf32, #tpu.memory_space<vmem>>, %arg8: memref<128x128xf32, #tpu.memory_space<vmem>>, %arg9: memref<1x128xf32, #tpu.memory_space<vmem>>, %arg10: memref<128x128xf32, #tpu.memory_space<vmem>>, %arg11: memref<128x128xf32, #tpu.memory_space<vmem>>, %arg12: memref<1x128xf32, #tpu.memory_space<vmem>>, %arg13: memref<128x128xf32, #tpu.memory_space<vmem>>, %arg14: memref<1x128xf32, #tpu.memory_space<vmem>>) attributes {dimension_semantics = [#tpu.dimension_semantics<arbitrary>], iteration_bounds = array<i64: 4>, scalar_prefetch = 0 : i64, scratch_operands = 4 : i64, tpu.core_type = #tpu.core_type<tc>, window_params = [{transform_indices = @transform_0, window_bounds = array<i64: 8, 128>}, {transform_indices = @transform_1, window_bounds = array<i64: 8, 128>}, {pipeline_mode = #tpu.pipeline_mode<synchronous>, transform_indices = @transform_2, window_bounds = array<i64: 1, 128>}, {pipeline_mode = #tpu.pipeline_mode<synchronous>, transform_indices = @transform_3, window_bounds = array<i64: 128, 128>}, {pipeline_mode = #tpu.pipeline_mode<synchronous>, transform_indices = @transform_4, window_bounds = array<i64: 1, 128>}, {pipeline_mode = #tpu.pipeline_mode<synchronous>, transform_indices = @transform_5, window_bounds = array<i64: 128, 128>}, {pipeline_mode = #tpu.pipeline_mode<synchronous>, transform_indices = @transform_6, window_bounds = array<i64: 1, 128>}, {pipeline_mode = #tpu.pipeline_mode<synchronous>, transform_indices = @transform_7, window_bounds = array<i64: 128, 128>}, {pipeline_mode = #tpu.pipeline_mode<synchronous>, transform_indices = @transform_8, window_bounds = array<i64: 1, 128>}, {pipeline_mode = #tpu.pipeline_mode<synchronous>, transform_indices = @transform_9, window_bounds = array<i64: 128, 128>}]} {
    %c0_i32 = arith.constant 0 : i32
    %0 = arith.cmpi eq, %arg0, %c0_i32 : i32
    %1 = arith.extui %0 : i1 to i32
    %c0_i32_0 = arith.constant 0 : i32
    %2 = arith.cmpi ne, %1, %c0_i32_0 : i32
    scf.if %2 {
      %cst_26 = arith.constant 0.000000e+00 : f32
      %40 = vector.broadcast %cst_26 : f32 to vector<128x128xf32>
      %c0_27 = arith.constant 0 : index
      %c0_28 = arith.constant 0 : index
      %41 = vector.load %arg11[%c0_27, %c0_28] : memref<128x128xf32, #tpu.memory_space<vmem>>, vector<128x128xf32>
      tpu.vector_store %arg11[%c0_27, %c0_28], %40 {strides = array<i32>} : memref<128x128xf32, #tpu.memory_space<vmem>>, vector<128x128xf32>,
      %cst_29 = arith.constant 0.000000e+00 : f32
      %42 = vector.broadcast %cst_29 : f32 to vector<1x128xf32>
      %c0_30 = arith.constant 0 : index
      %c0_31 = arith.constant 0 : index
      %43 = vector.load %arg12[%c0_30, %c0_31] : memref<1x128xf32, #tpu.memory_space<vmem>>, vector<1x128xf32>
      tpu.vector_store %arg12[%c0_30, %c0_31], %42 {strides = array<i32>} : memref<1x128xf32, #tpu.memory_space<vmem>>, vector<1x128xf32>,
      %cst_32 = arith.constant 0.000000e+00 : f32
      %44 = vector.broadcast %cst_32 : f32 to vector<128x128xf32>
      %c0_33 = arith.constant 0 : index
      %c0_34 = arith.constant 0 : index
      %45 = vector.load %arg13[%c0_33, %c0_34] : memref<128x128xf32, #tpu.memory_space<vmem>>, vector<128x128xf32>
      tpu.vector_store %arg13[%c0_33, %c0_34], %44 {strides = array<i32>} : memref<128x128xf32, #tpu.memory_space<vmem>>, vector<128x128xf32>,
      %cst_35 = arith.constant 0.000000e+00 : f32
      %46 = vector.broadcast %cst_35 : f32 to vector<1x128xf32>
      %c0_36 = arith.constant 0 : index
      %c0_37 = arith.constant 0 : index
      %47 = vector.load %arg14[%c0_36, %c0_37] : memref<1x128xf32, #tpu.memory_space<vmem>>, vector<1x128xf32>
      tpu.vector_store %arg14[%c0_36, %c0_37], %46 {strides = array<i32>} : memref<1x128xf32, #tpu.memory_space<vmem>>, vector<1x128xf32>,
    } else {
    }
    %c0 = arith.constant 0 : index
    %c0_1 = arith.constant 0 : index
    %3 = vector.load %arg1[%c0, %c0_1] : memref<8x128xf32, #tpu.memory_space<vmem>>, vector<8x128xf32>
    %c0_2 = arith.constant 0 : index
    %c0_3 = arith.constant 0 : index
    %4 = vector.load %arg2[%c0_2, %c0_3] : memref<8x128xf32, #tpu.memory_space<vmem>>, vector<8x128xf32>
    %5 = tpu.iota {dimensions = array<i32: 0>} : vector<8x1xi32>
    %c8_i32 = arith.constant 8 : i32
    %6 = arith.muli %arg0, %c8_i32 : i32
    %7 = vector.broadcast %6 : i32 to vector<8x1xi32>
    %8 = arith.addi %5, %7 : vector<8x1xi32>
    %c28_i32 = arith.constant 28 : i32
    %9 = vector.broadcast %c28_i32 : i32 to vector<8x1xi32>
    %10 = arith.cmpi slt, %8, %9 : vector<8x1xi32>
    %cst = arith.constant 0.000000e+00 : f32
    %11 = vector.shape_cast %10 : vector<8x1xi1> to vector<8x1xi1>
    %12 = vector.broadcast %11 : vector<8x1xi1> to vector<8x128xi1>
    %13 = vector.broadcast %cst : f32 to vector<8x128xf32>
    %14 = arith.select %12, %3, %13 : vector<8x128xi1>, vector<8x128xf32>
    %cst_4 = arith.constant 0.000000e+00 : f32
    %15 = vector.shape_cast %10 : vector<8x1xi1> to vector<8x1xi1>
    %16 = vector.broadcast %15 : vector<8x1xi1> to vector<8x128xi1>
    %17 = vector.broadcast %cst_4 : f32 to vector<8x128xf32>
    %18 = arith.select %16, %4, %17 : vector<8x128xi1>, vector<8x128xf32>
    %c0_5 = arith.constant 0 : index
    %c0_6 = arith.constant 0 : index
    %19 = vector.load %arg11[%c0_5, %c0_6] : memref<128x128xf32, #tpu.memory_space<vmem>>, vector<128x128xf32>
    %cst_7 = arith.constant dense<0.000000e+00> : vector<128x128xf32>
    %20 = tpu.matmul %14, %14, %cst_7 {dimension_numbers = #tpu.dot_dimension_numbers<[0], [0], [1], [1], [0, 1, 1, 1], [], []>} : vector<8x128xf32>, vector<8x128xf32>, vector<128x128xf32> -> vector<128x128xf32>
    %21 = arith.addf %19, %20 : vector<128x128xf32>
    %c0_8 = arith.constant 0 : index
    %c0_9 = arith.constant 0 : index
    %22 = vector.load %arg11[%c0_8, %c0_9] : memref<128x128xf32, #tpu.memory_space<vmem>>, vector<128x128xf32>
    tpu.vector_store %arg11[%c0_8, %c0_9], %21 {strides = array<i32>} : memref<128x128xf32, #tpu.memory_space<vmem>>, vector<128x128xf32>,
    %c0_10 = arith.constant 0 : index
    %c0_11 = arith.constant 0 : index
    %23 = vector.load %arg13[%c0_10, %c0_11] : memref<128x128xf32, #tpu.memory_space<vmem>>, vector<128x128xf32>
    %cst_12 = arith.constant dense<0.000000e+00> : vector<128x128xf32>
    %24 = tpu.matmul %18, %18, %cst_12 {dimension_numbers = #tpu.dot_dimension_numbers<[0], [0], [1], [1], [0, 1, 1, 1], [], []>} : vector<8x128xf32>, vector<8x128xf32>, vector<128x128xf32> -> vector<128x128xf32>
    %25 = arith.addf %23, %24 : vector<128x128xf32>
    %c0_13 = arith.constant 0 : index
    %c0_14 = arith.constant 0 : index
    %26 = vector.load %arg13[%c0_13, %c0_14] : memref<128x128xf32, #tpu.memory_space<vmem>>, vector<128x128xf32>
    tpu.vector_store %arg13[%c0_13, %c0_14], %25 {strides = array<i32>} : memref<128x128xf32, #tpu.memory_space<vmem>>, vector<128x128xf32>,
    %c0_15 = arith.constant 0 : index
    %c0_16 = arith.constant 0 : index
    %27 = vector.load %arg12[%c0_15, %c0_16] : memref<1x128xf32, #tpu.memory_space<vmem>>, vector<1x128xf32>
    %cst_17 = arith.constant dense<0.000000e+00> : vector<128xf32>
    %28 = vector.multi_reduction <add>, %14, %cst_17 [0] : vector<8x128xf32> to vector<128xf32>
    %29 = vector.shape_cast %28 : vector<128xf32> to vector<1x128xf32>
    %30 = arith.addf %27, %29 : vector<1x128xf32>
    %c0_18 = arith.constant 0 : index
    %c0_19 = arith.constant 0 : index
    %31 = vector.load %arg12[%c0_18, %c0_19] : memref<1x128xf32, #tpu.memory_space<vmem>>, vector<1x128xf32>
    tpu.vector_store %arg12[%c0_18, %c0_19], %30 {strides = array<i32>} : memref<1x128xf32, #tpu.memory_space<vmem>>, vector<1x128xf32>,
    %c0_20 = arith.constant 0 : index
    %c0_21 = arith.constant 0 : index
    %32 = vector.load %arg14[%c0_20, %c0_21] : memref<1x128xf32, #tpu.memory_space<vmem>>, vector<1x128xf32>
    %cst_22 = arith.constant dense<0.000000e+00> : vector<128xf32>
    %33 = vector.multi_reduction <add>, %18, %cst_22 [0] : vector<8x128xf32> to vector<128xf32>
    %34 = vector.shape_cast %33 : vector<128xf32> to vector<1x128xf32>
    %35 = arith.addf %32, %34 : vector<1x128xf32>
    %c0_23 = arith.constant 0 : index
    %c0_24 = arith.constant 0 : index
    %36 = vector.load %arg14[%c0_23, %c0_24] : memref<1x128xf32, #tpu.memory_space<vmem>>, vector<1x128xf32>
    tpu.vector_store %arg14[%c0_23, %c0_24], %35 {strides = array<i32>} : memref<1x128xf32, #tpu.memory_space<vmem>>, vector<1x128xf32>,
    %c3_i32 = arith.constant 3 : i32
    %37 = arith.cmpi eq, %arg0, %c3_i32 : i32
    %38 = arith.extui %37 : i1 to i32
    %c0_i32_25 = arith.constant 0 : i32
    %39 = arith.cmpi ne, %38, %c0_i32_25 : i32
    scf.if %39 {
      %c0_26 = arith.constant 0 : index
      %c0_27 = arith.constant 0 : index
      %40 = vector.load %arg12[%c0_26, %c0_27] : memref<1x128xf32, #tpu.memory_space<vmem>>, vector<1x128xf32>
      %cst_28 = arith.constant 0.0357142873 : f32
      %41 = vector.broadcast %cst_28 : f32 to vector<1x128xf32>
      %42 = arith.mulf %40, %41 : vector<1x128xf32>
      %c0_29 = arith.constant 0 : index
      %c0_30 = arith.constant 0 : index
      %43 = vector.load %arg3[%c0_29, %c0_30] : memref<1x128xf32, #tpu.memory_space<vmem>>, vector<1x128xf32>
      %cst_31 = arith.constant 0.00999999977 : f32
      %44 = vector.broadcast %cst_31 : f32 to vector<1x128xf32>
      %45 = arith.mulf %44, %43 : vector<1x128xf32>
      %cst_32 = arith.constant 9.900000e-01 : f32
      %46 = vector.broadcast %cst_32 : f32 to vector<1x128xf32>
      %47 = arith.mulf %46, %42 : vector<1x128xf32>
      %48 = arith.addf %45, %47 : vector<1x128xf32>
      %c0_33 = arith.constant 0 : index
      %c0_34 = arith.constant 0 : index
      %49 = vector.load %arg7[%c0_33, %c0_34] : memref<1x128xf32, #tpu.memory_space<vmem>>, vector<1x128xf32>
      tpu.vector_store %arg7[%c0_33, %c0_34], %48 {strides = array<i32>} : memref<1x128xf32, #tpu.memory_space<vmem>>, vector<1x128xf32>,
      %50 = arith.subf %42, %48 : vector<1x128xf32>
      %51 = vector.shape_cast %42 : vector<1x128xf32> to vector<1x128xf32>
      %52 = vector.broadcast %51 : vector<1x128xf32> to vector<128x128xf32>
      %53 = vector.shape_cast %50 : vector<1x128xf32> to vector<1x128xf32>
      %54 = vector.broadcast %53 : vector<1x128xf32> to vector<128x128xf32>
      %c0_35 = arith.constant 0 : index
      %c0_36 = arith.constant 0 : index
      %55 = vector.load %arg11[%c0_35, %c0_36] : memref<128x128xf32, #tpu.memory_space<vmem>>, vector<128x128xf32>
      %56 = tpu.transpose %54, [1, 0] : vector<128x128xf32> -> vector<128x128xf32>
      %57 = arith.mulf %56, %54 : vector<128x128xf32>
      %58 = tpu.transpose %52, [1, 0] : vector<128x128xf32> -> vector<128x128xf32>
      %59 = arith.mulf %58, %52 : vector<128x128xf32>
      %60 = arith.subf %57, %59 : vector<128x128xf32>
      %cst_37 = arith.constant 2.800000e+01 : f32
      %61 = vector.broadcast %cst_37 : f32 to vector<128x128xf32>
      %62 = arith.mulf %61, %60 : vector<128x128xf32>
      %63 = arith.addf %55, %62 : vector<128x128xf32>
      %c0_38 = arith.constant 0 : index
      %c0_39 = arith.constant 0 : index
      %64 = vector.load %arg4[%c0_38, %c0_39] : memref<128x128xf32, #tpu.memory_space<vmem>>, vector<128x128xf32>
      %cst_40 = arith.constant 0.00999999977 : f32
      %65 = vector.broadcast %cst_40 : f32 to vector<128x128xf32>
      %66 = arith.mulf %65, %64 : vector<128x128xf32>
      %cst_41 = arith.constant 0.0353571437 : f32
      %67 = vector.broadcast %cst_41 : f32 to vector<128x128xf32>
      %68 = arith.mulf %67, %63 : vector<128x128xf32>
      %69 = arith.addf %66, %68 : vector<128x128xf32>
      %c0_42 = arith.constant 0 : index
      %c0_43 = arith.constant 0 : index
      %70 = vector.load %arg8[%c0_42, %c0_43] : memref<128x128xf32, #tpu.memory_space<vmem>>, vector<128x128xf32>
      tpu.vector_store %arg8[%c0_42, %c0_43], %69 {strides = array<i32>} : memref<128x128xf32, #tpu.memory_space<vmem>>, vector<128x128xf32>,
      %c0_44 = arith.constant 0 : index
      %c0_45 = arith.constant 0 : index
      %71 = vector.load %arg14[%c0_44, %c0_45] : memref<1x128xf32, #tpu.memory_space<vmem>>, vector<1x128xf32>
      %cst_46 = arith.constant 0.0357142873 : f32
      %72 = vector.broadcast %cst_46 : f32 to vector<1x128xf32>
      %73 = arith.mulf %71, %72 : vector<1x128xf32>
      %c0_47 = arith.constant 0 : index
      %c0_48 = arith.constant 0 : index
      %74 = vector.load %arg5[%c0_47, %c0_48] : memref<1x128xf32, #tpu.memory_space<vmem>>, vector<1x128xf32>
      %cst_49 = arith.constant 0.00999999977 : f32
      %75 = vector.broadcast %cst_49 : f32 to vector<1x128xf32>
      %76 = arith.mulf %75, %74 : vector<1x128xf32>
      %cst_50 = arith.constant 9.900000e-01 : f32
      %77 = vector.broadcast %cst_50 : f32 to vector<1x128xf32>
      %78 = arith.mulf %77, %73 : vector<1x128xf32>
      %79 = arith.addf %76, %78 : vector<1x128xf32>
      %c0_51 = arith.constant 0 : index
      %c0_52 = arith.constant 0 : index
      %80 = vector.load %arg9[%c0_51, %c0_52] : memref<1x128xf32, #tpu.memory_space<vmem>>, vector<1x128xf32>
      tpu.vector_store %arg9[%c0_51, %c0_52], %79 {strides = array<i32>} : memref<1x128xf32, #tpu.memory_space<vmem>>, vector<1x128xf32>,
      %81 = arith.subf %73, %79 : vector<1x128xf32>
      %82 = vector.shape_cast %73 : vector<1x128xf32> to vector<1x128xf32>
      %83 = vector.broadcast %82 : vector<1x128xf32> to vector<128x128xf32>
      %84 = vector.shape_cast %81 : vector<1x128xf32> to vector<1x128xf32>
      %85 = vector.broadcast %84 : vector<1x128xf32> to vector<128x128xf32>
      %c0_53 = arith.constant 0 : index
      %c0_54 = arith.constant 0 : index
      %86 = vector.load %arg13[%c0_53, %c0_54] : memref<128x128xf32, #tpu.memory_space<vmem>>, vector<128x128xf32>
      %87 = tpu.transpose %85, [1, 0] : vector<128x128xf32> -> vector<128x128xf32>
      %88 = arith.mulf %87, %85 : vector<128x128xf32>
      %89 = tpu.transpose %83, [1, 0] : vector<128x128xf32> -> vector<128x128xf32>
      %90 = arith.mulf %89, %83 : vector<128x128xf32>
      %91 = arith.subf %88, %90 : vector<128x128xf32>
      %cst_55 = arith.constant 2.800000e+01 : f32
      %92 = vector.broadcast %cst_55 : f32 to vector<128x128xf32>
      %93 = arith.mulf %92, %91 : vector<128x128xf32>
      %94 = arith.addf %86, %93 : vector<128x128xf32>
      %c0_56 = arith.constant 0 : index
      %c0_57 = arith.constant 0 : index
      %95 = vector.load %arg6[%c0_56, %c0_57] : memref<128x128xf32, #tpu.memory_space<vmem>>, vector<128x128xf32>
      %cst_58 = arith.constant 0.00999999977 : f32
      %96 = vector.broadcast %cst_58 : f32 to vector<128x128xf32>
      %97 = arith.mulf %96, %95 : vector<128x128xf32>
      %cst_59 = arith.constant 0.0353571437 : f32
      %98 = vector.broadcast %cst_59 : f32 to vector<128x128xf32>
      %99 = arith.mulf %98, %94 : vector<128x128xf32>
      %100 = arith.addf %97, %99 : vector<128x128xf32>
      %c0_60 = arith.constant 0 : index
      %c0_61 = arith.constant 0 : index
      %101 = vector.load %arg10[%c0_60, %c0_61] : memref<128x128xf32, #tpu.memory_space<vmem>>, vector<128x128xf32>
      tpu.vector_store %arg10[%c0_60, %c0_61], %100 {strides = array<i32>} : memref<128x128xf32, #tpu.memory_space<vmem>>, vector<128x128xf32>,
    } else {
    }
    return
  }
  func.func @transform_0(%arg0: i32) -> (i32, i32) {
    %c0_i32 = arith.constant 0 : i32
    %c0_i32_0 = arith.constant 0 : i32
    return %arg0, %c0_i32 : i32, i32
  }
  func.func @transform_1(%arg0: i32) -> (i32, i32) {
    %c0_i32 = arith.constant 0 : i32
    %c0_i32_0 = arith.constant 0 : i32
    return %arg0, %c0_i32 : i32, i32
  }
  func.func @transform_2(%arg0: i32) -> (i32, i32) {
    %c0_i32 = arith.constant 0 : i32
    %c0_i32_0 = arith.constant 0 : i32
    %c0_i32_1 = arith.constant 0 : i32
    return %c0_i32, %c0_i32_0 : i32, i32
  }
  func.func @transform_3(%arg0: i32) -> (i32, i32) {
    %c0_i32 = arith.constant 0 : i32
    %c0_i32_0 = arith.constant 0 : i32
    %c0_i32_1 = arith.constant 0 : i32
    return %c0_i32, %c0_i32_0 : i32, i32
  }
  func.func @transform_4(%arg0: i32) -> (i32, i32) {
    %c0_i32 = arith.constant 0 : i32
    %c0_i32_0 = arith.constant 0 : i32
    %c0_i32_1 = arith.constant 0 : i32
    return %c0_i32, %c0_i32_0 : i32, i32
  }
  func.func @transform_5(%arg0: i32) -> (i32, i32) {
    %c0_i32 = arith.constant 0 : i32
    %c0_i32_0 = arith.constant 0 : i32
    %c0_i32_1 = arith.constant 0 : i32
    return %c0_i32, %c0_i32_0 : i32, i32
  }
  func.func @transform_6(%arg0: i32) -> (i32, i32) {
    %c0_i32 = arith.constant 0 : i32
    %c0_i32_0 = arith.constant 0 : i32
    %c0_i32_1 = arith.constant 0 : i32
    return %c0_i32, %c0_i32_0 : i32, i32
  }
  func.func @transform_7(%arg0: i32) -> (i32, i32) {
    %c0_i32 = arith.constant 0 : i32
    %c0_i32_0 = arith.constant 0 : i32
    %c0_i32_1 = arith.constant 0 : i32
    return %c0_i32, %c0_i32_0 : i32, i32
  }
  func.func @transform_8(%arg0: i32) -> (i32, i32) {
    %c0_i32 = arith.constant 0 : i32
    %c0_i32_0 = arith.constant 0 : i32
    %c0_i32_1 = arith.constant 0 : i32
    return %c0_i32, %c0_i32_0 : i32, i32
  }
  func.func @transform_9(%arg0: i32) -> (i32, i32) {
    %c0_i32 = arith.constant 0 : i32
    %c0_i32_0 = arith.constant 0 : i32
    %c0_i32_1 = arith.constant 0 : i32
    return %c0_i32, %c0_i32_0 : i32, i32
  }
}

</mosaic_0001>

<llo_original>
// kernel: tpu_custom_call.1
$region0: #{tpu_custom_call.1}
  #allocation0 [shape = 'u32[]', space=smem, size = 0x4, offset = 0x4, fixed_abs, tag = 'smem constant byte address 0x4 - core index']
  #allocation1 [shape = 'u32[72,128]{1,0:T(1,128)}', space=vmem, size = 0x9000, scoped, tag = 'internal scratch']
  #allocation2 [shape = 'f32[128,128]{1,0:T(8,128)}', space=vmem, size = 0x10000, scoped, tag = 'scratch operand']
  #allocation3 [shape = 'f32[1,128]{1,0:T(1,128)}', space=vmem, size = 0x200, scoped, tag = 'scratch operand']
  #allocation4 [shape = 'f32[128,128]{1,0:T(8,128)}', space=vmem, size = 0x10000, scoped, tag = 'scratch operand']
  #allocation5 [shape = 'f32[1,128]{1,0:T(1,128)}', space=vmem, size = 0x200, scoped, tag = 'scratch operand']
  %s0 = inlined_call_operand.vmem [shape: f32[28,128], index: 0, kind: input, shape index: {}]
  %s1 = inlined_call_operand.vmem [shape: f32[28,128], index: 1, kind: input, shape index: {}]
  %s2 = inlined_call_operand.hbm [shape: f32[1,128], index: 2, kind: input, shape index: {}, may-alias: {2,6}]
  %s3 = inlined_call_operand.hbm [shape: f32[128,128], index: 3, kind: input, shape index: {}, may-alias: {3,7}]
  %s4 = inlined_call_operand.hbm [shape: f32[1,128], index: 4, kind: input, shape index: {}, may-alias: {4,8}]
  %s5 = inlined_call_operand.hbm [shape: f32[128,128], index: 5, kind: input, shape index: {}, may-alias: {5,9}]
  %s6 = inlined_call_operand.hbm [shape: f32[1,128], index: 6, kind: output, shape index: {0}, may-alias: {2,6}]
  %s7 = inlined_call_operand.hbm [shape: f32[128,128], index: 7, kind: output, shape index: {1}, may-alias: {3,7}]
  %s8 = inlined_call_operand.hbm [shape: f32[1,128], index: 8, kind: output, shape index: {2}, may-alias: {4,8}]
  %s9 = inlined_call_operand.hbm [shape: f32[128,128], index: 9, kind: output, shape index: {3}, may-alias: {5,9}]
  %10 = xla_tuple %s6, %s7, %s8, %s9
  %s11 = sld [smem:[#allocation0]]
  $region105: #{tpu_custom_call.1} parent=0
    _
  %s13 = ssub.s32 1, %s11
  %s14 = scalar_select 0, %s13, %s11
  $region1: #{tpu_custom_call.1} parent=0
    #allocation6 [shape = 'u8[512]{0}', space=vmem, size = 0x400, scoped, tag = 'input window, operand 2, single buffered']
    #allocation7 [shape = 's32[2]{0}', space=sflag, size = 0x8, scoped, tag = 'scoped memory for tpu_custom_call.1']
    #allocation8 [shape = 's32[2]{0}', space=sflag, size = 0x8, scoped, tag = 'scoped memory for tpu_custom_call.1']
    #allocation9 [shape = 'u8[65536]{0}', space=vmem, size = 0x10000, scoped, tag = 'input window, operand 3, single buffered']
    #allocation10 [shape = 's32[1]{0}', space=sflag, size = 0x4, scoped, tag = 'scoped memory for tpu_custom_call.1']
    #allocation11 [shape = 'u8[512]{0}', space=vmem, size = 0x400, scoped, tag = 'input window, operand 4, single buffered']
    #allocation12 [shape = 'u8[65536]{0}', space=vmem, size = 0x10000, scoped, tag = 'input window, operand 5, single buffered']
    #allocation13 [shape = 's32[1]{0}', space=sflag, size = 0x4, scoped, tag = 'scoped memory for tpu_custom_call.1']
    #allocation14 [shape = 'u8[512]{0}', space=vmem, size = 0x400, scoped, tag = 'output window, operand 0, single buffered']
    #allocation15 [shape = 'u8[65536]{0}', space=vmem, size = 0x10000, scoped, tag = 'output window, operand 1, single buffered']
    #allocation16 [shape = 's32[1]{0}', space=sflag, size = 0x4, scoped, tag = 'scoped memory for tpu_custom_call.1']
    #allocation17 [shape = 'u8[512]{0}', space=vmem, size = 0x400, scoped, tag = 'output window, operand 2, single buffered']
    #allocation18 [shape = 'u8[65536]{0}', space=vmem, size = 0x10000, scoped, tag = 'output window, operand 3, single buffered']
    #allocation19 [shape = 's32[1]{0}', space=sflag, size = 0x4, scoped, tag = 'scoped memory for tpu_custom_call.1']
    %15 = vsyncpa [#allocation7], 0
    %16 = vsyncpa [#allocation10], 0
    %17 = vsyncpa [#allocation13], 0
    %18 = vsyncpa [#allocation8], 0
    %19 = vsyncpa [#allocation16], 0
    %20 = vsyncpa [#allocation19], 0
    loop: start=0, step=1, limit=6
    $region2: #{tpu_custom_call.1} parent=1 // loop_pre_header
      _
    $region3: #{tpu_custom_call.1} parent=1 // loop_header
      %s22 = sphi 0, %s26
      %p23 = scmp.ge.s32.totalorder %s22, 6
      %s32 = sphi 0, %s34
      %s35 = sphi 0, %s32
      %s36 = sphi 0, %s35
      %s52 = sphi 0, %s36
      %s58 = sphi 0, %s60
      %s61 = sphi 0, %s58
      %s62 = sphi 0, %s61
      %s78 = sphi 0, %s62
      %s82 = sphi 0, %s82
      %s84 = sphi 0, %s82
      %s85 = sphi 0, %s84
      %s99 = sphi 0, %s85
      %s103 = sphi 0, %s103
      %s105 = sphi 0, %s103
      %s106 = sphi 0, %s105
      %s120 = sphi 0, %s106
      %s124 = sphi 0, %s124
      %s126 = sphi 0, %s124
      %s127 = sphi 0, %s126
      %s141 = sphi 0, %s127
      %s145 = sphi 0, %s145
      %s147 = sphi 0, %s145
      %s148 = sphi 0, %s147
      %s162 = sphi 0, %s148
      %s166 = sphi 0, %s166
      %s168 = sphi 0, %s166
      %s169 = sphi 0, %s168
      %s183 = sphi 0, %s169
      %s187 = sphi 0, %s187
      %s189 = sphi 0, %s187
      %s190 = sphi 0, %s189
      %s204 = sphi 0, %s190
      %s208 = sphi 0, %s208
      %s210 = sphi 0, %s208
      %s211 = sphi 0, %s210
      %s225 = sphi 0, %s211
      %s229 = sphi 0, %s229
      %s231 = sphi 0, %s229
      %s232 = sphi 0, %s231
      %s246 = sphi 0, %s232
    $region4: #{tpu_custom_call.1} parent=1 // loop_header_branch
      %25 = sbr.rel (%p23) target = $region8
    $region5: #{tpu_custom_call.1} parent=1 // loop_body
      %s27 = ssub.s32 %s22, 1
      %s28 = ssub.s32 %s22, 2
      %s29 = sadd.s32 %s22, 1
      %s30 = ssub.s32 %s22, %s29
      %p31 = scmp.eq.s32.totalorder %s30, 0
      %s33 = sadd.s32 %s32, 1
      %s34 = scalar_select %p31, %s32, %s33
      %p37 = pneg %p31
      %p38 = scmp.eq.s32.totalorder %s22, 3
      %p39 = por %p37, %p38
      %p40 = scmp.ne.s32.totalorder %s32, %s35
      %p41 = scmp.eq.s32.totalorder %s22, 0
      %p42 = por %p40, %p41
      %p43 = scmp.ne.s32.totalorder %s32, %s35
      %p44 = scmp.eq.s32.totalorder %s27, 3
      %p45 = por %p43, %p44
      %p46 = scmp.ne.s32.totalorder %s35, %s36
      %p47 = scmp.eq.s32.totalorder %s27, 0
      %p48 = por %p46, %p47
      %p49 = scmp.ne.s32.totalorder %s35, %s36
      %p50 = scmp.eq.s32.totalorder %s28, 3
      %p51 = por %p49, %p50
      %p53 = scmp.ne.s32.totalorder %s36, %s52
      %p54 = scmp.eq.s32.totalorder %s28, 0
      %p55 = por %p53, %p54
      %s56 = ssub.s32 %s22, %s29
      %p57 = scmp.eq.s32.totalorder %s56, 0
      %s59 = sadd.s32 %s58, 1
      %s60 = scalar_select %p57, %s58, %s59
      %p63 = pneg %p57
      %p64 = scmp.eq.s32.totalorder %s22, 3
      %p65 = por %p63, %p64
      %p66 = scmp.ne.s32.totalorder %s58, %s61
      %p67 = scmp.eq.s32.totalorder %s22, 0
      %p68 = por %p66, %p67
      %p69 = scmp.ne.s32.totalorder %s58, %s61
      %p70 = scmp.eq.s32.totalorder %s27, 3
      %p71 = por %p69, %p70
      %p72 = scmp.ne.s32.totalorder %s61, %s62
      %p73 = scmp.eq.s32.totalorder %s27, 0
      %p74 = por %p72, %p73
      %p75 = scmp.ne.s32.totalorder %s61, %s62
      %p76 = scmp.eq.s32.totalorder %s28, 3
      %p77 = por %p75, %p76
      %p79 = scmp.ne.s32.totalorder %s62, %s78
      %p80 = scmp.eq.s32.totalorder %s28, 0
      %p81 = por %p79, %p80
      %s83 = sadd.s32 %s82, 1
      %p86 = scmp.eq.s32.totalorder %s22, 3
      %p87 = scmp.ne.s32.totalorder %s82, %s84
      %p88 = scmp.eq.s32.totalorder %s22, 0
      %p89 = por %p87, %p88
      %p90 = scmp.ne.s32.totalorder %s82, %s84
      %p91 = scmp.eq.s32.totalorder %s27, 3
      %p92 = por %p90, %p91
      %p93 = scmp.ne.s32.totalorder %s84, %s85
      %p94 = scmp.eq.s32.totalorder %s27, 0
      %p95 = por %p93, %p94
      %p96 = scmp.ne.s32.totalorder %s84, %s85
      %p97 = scmp.eq.s32.totalorder %s28, 3
      %p98 = por %p96, %p97
      %p100 = scmp.ne.s32.totalorder %s85, %s99
      %p101 = scmp.eq.s32.totalorder %s28, 0
      %p102 = por %p100, %p101
      %s104 = sadd.s32 %s103, 1
      %p107 = scmp.eq.s32.totalorder %s22, 3
      %p108 = scmp.ne.s32.totalorder %s103, %s105
      %p109 = scmp.eq.s32.totalorder %s22, 0
      %p110 = por %p108, %p109
      %p111 = scmp.ne.s32.totalorder %s103, %s105
      %p112 = scmp.eq.s32.totalorder %s27, 3
      %p113 = por %p111, %p112
      %p114 = scmp.ne.s32.totalorder %s105, %s106
      %p115 = scmp.eq.s32.totalorder %s27, 0
      %p116 = por %p114, %p115
      %p117 = scmp.ne.s32.totalorder %s105, %s106
      %p118 = scmp.eq.s32.totalorder %s28, 3
      %p119 = por %p117, %p118
      %p121 = scmp.ne.s32.totalorder %s106, %s120
      %p122 = scmp.eq.s32.totalorder %s28, 0
      %p123 = por %p121, %p122
      %s125 = sadd.s32 %s124, 1
      %p128 = scmp.eq.s32.totalorder %s22, 3
      %p129 = scmp.ne.s32.totalorder %s124, %s126
      %p130 = scmp.eq.s32.totalorder %s22, 0
      %p131 = por %p129, %p130
      %p132 = scmp.ne.s32.totalorder %s124, %s126
      %p133 = scmp.eq.s32.totalorder %s27, 3
      %p134 = por %p132, %p133
      %p135 = scmp.ne.s32.totalorder %s126, %s127
      %p136 = scmp.eq.s32.totalorder %s27, 0
      %p137 = por %p135, %p136
      %p138 = scmp.ne.s32.totalorder %s126, %s127
      %p139 = scmp.eq.s32.totalorder %s28, 3
      %p140 = por %p138, %p139
      %p142 = scmp.ne.s32.totalorder %s127, %s141
      %p143 = scmp.eq.s32.totalorder %s28, 0
      %p144 = por %p142, %p143
      %s146 = sadd.s32 %s145, 1
      %p149 = scmp.eq.s32.totalorder %s22, 3
      %p150 = scmp.ne.s32.totalorder %s145, %s147
      %p151 = scmp.eq.s32.totalorder %s22, 0
      %p152 = por %p150, %p151
      %p153 = scmp.ne.s32.totalorder %s145, %s147
      %p154 = scmp.eq.s32.totalorder %s27, 3
      %p155 = por %p153, %p154
      %p156 = scmp.ne.s32.totalorder %s147, %s148
      %p157 = scmp.eq.s32.totalorder %s27, 0
      %p158 = por %p156, %p157
      %p159 = scmp.ne.s32.totalorder %s147, %s148
      %p160 = scmp.eq.s32.totalorder %s28, 3
      %p161 = por %p159, %p160
      %p163 = scmp.ne.s32.totalorder %s148, %s162
      %p164 = scmp.eq.s32.totalorder %s28, 0
      %p165 = por %p163, %p164
      %s167 = sadd.s32 %s166, 1
      %p170 = scmp.eq.s32.totalorder %s22, 3
      %p171 = scmp.ne.s32.totalorder %s166, %s168
      %p172 = scmp.eq.s32.totalorder %s22, 0
      %p173 = por %p171, %p172
      %p174 = scmp.ne.s32.totalorder %s166, %s168
      %p175 = scmp.eq.s32.totalorder %s27, 3
      %p176 = por %p174, %p175
      %p177 = scmp.ne.s32.totalorder %s168, %s169
      %p178 = scmp.eq.s32.totalorder %s27, 0
      %p179 = por %p177, %p178
      %p180 = scmp.ne.s32.totalorder %s168, %s169
      %p181 = scmp.eq.s32.totalorder %s28, 3
      %p182 = por %p180, %p181
      %p184 = scmp.ne.s32.totalorder %s169, %s183
      %p185 = scmp.eq.s32.totalorder %s28, 0
      %p186 = por %p184, %p185
      %s188 = sadd.s32 %s187, 1
      %p191 = scmp.eq.s32.totalorder %s22, 3
      %p192 = scmp.ne.s32.totalorder %s187, %s189
      %p193 = scmp.eq.s32.totalorder %s22, 0
      %p194 = por %p192, %p193
      %p195 = scmp.ne.s32.totalorder %s187, %s189
      %p196 = scmp.eq.s32.totalorder %s27, 3
      %p197 = por %p195, %p196
      %p198 = scmp.ne.s32.totalorder %s189, %s190
      %p199 = scmp.eq.s32.totalorder %s27, 0
      %p200 = por %p198, %p199
      %p201 = scmp.ne.s32.totalorder %s189, %s190
      %p202 = scmp.eq.s32.totalorder %s28, 3
      %p203 = por %p201, %p202
      %p205 = scmp.ne.s32.totalorder %s190, %s204
      %p206 = scmp.eq.s32.totalorder %s28, 0
      %p207 = por %p205, %p206
      %s209 = sadd.s32 %s208, 1
      %p212 = scmp.eq.s32.totalorder %s22, 3
      %p213 = scmp.ne.s32.totalorder %s208, %s210
      %p214 = scmp.eq.s32.totalorder %s22, 0
      %p215 = por %p213, %p214
      %p216 = scmp.ne.s32.totalorder %s208, %s210
      %p217 = scmp.eq.s32.totalorder %s27, 3
      %p218 = por %p216, %p217
      %p219 = scmp.ne.s32.totalorder %s210, %s211
      %p220 = scmp.eq.s32.totalorder %s27, 0
      %p221 = por %p219, %p220
      %p222 = scmp.ne.s32.totalorder %s210, %s211
      %p223 = scmp.eq.s32.totalorder %s28, 3
      %p224 = por %p222, %p223
      %p226 = scmp.ne.s32.totalorder %s211, %s225
      %p227 = scmp.eq.s32.totalorder %s28, 0
      %p228 = por %p226, %p227
      %s230 = sadd.s32 %s229, 1
      %p233 = scmp.eq.s32.totalorder %s22, 3
      %p234 = scmp.ne.s32.totalorder %s229, %s231
      %p235 = scmp.eq.s32.totalorder %s22, 0
      %p236 = por %p234, %p235
      %p237 = scmp.ne.s32.totalorder %s229, %s231
      %p238 = scmp.eq.s32.totalorder %s27, 3
      %p239 = por %p237, %p238
      %p240 = scmp.ne.s32.totalorder %s231, %s232
      %p241 = scmp.eq.s32.totalorder %s27, 0
      %p242 = por %p240, %p241
      %p243 = scmp.ne.s32.totalorder %s231, %s232
      %p244 = scmp.eq.s32.totalorder %s28, 3
      %p245 = por %p243, %p244
      %p247 = scmp.ne.s32.totalorder %s232, %s246
      %p248 = scmp.eq.s32.totalorder %s28, 0
      %p249 = por %p247, %p248
      %p250 = scmp.le.s32.totalorder 1, %s22
      %p251 = scmp.lt.s32.totalorder %s22, 5
      %p252 = pnand %p250, %p251
      %p253 = pneg %p252
      // Predicated region
      $region9: #{tpu_custom_call.1} parent=5 // pred_check
        _
      $region10: #{tpu_custom_call.1} parent=5 // pred_check_branch
        %255 = sbr.rel (%p252) target = $region12
      $region11: #{tpu_custom_call.1} parent=5 // pred_region
        %s256 = ssub.s32 %s22, 1
        // Predicated region
        $region13: #{tpu_custom_call.1} parent=11 // pred_check
          %p257 = pneg %p95
        $region14: #{tpu_custom_call.1} parent=11 // pred_check_branch
          %259 = sbr.rel (%p257) target = $region16
        $region15: #{tpu_custom_call.1} parent=11 // pred_region
          %261 = vsyncadd [#allocation7], 0
          %s263 = sshll.u32 %s2, 4
          %s264 = int_to_ptr.hbm [resolvable:$true] %s263
          %s265 = sshll.u32 [#allocation6], 4
          %s266 = int_to_ptr.vmem [resolvable:$true] %s265
          %268 = dma.hbm_to_vmem [thread:$0]  %s264, 16, %s266, [#allocation7]
        $region16: #{tpu_custom_call.1} parent=11 // pred_fallthru
          _
        // Predicated region
        $region17: #{tpu_custom_call.1} parent=11 // pred_check
          %p269 = pneg %p116
        $region18: #{tpu_custom_call.1} parent=11 // pred_check_branch
          %271 = sbr.rel (%p269) target = $region20
        $region19: #{tpu_custom_call.1} parent=11 // pred_region
          %273 = vsyncadd [#allocation10], 0
          %s274 = sshll.u32 %s3, 4
          %s275 = int_to_ptr.hbm [resolvable:$true] %s274
          %s276 = sshll.u32 [#allocation9], 4
          %s277 = int_to_ptr.vmem [resolvable:$true] %s276
          %282 = dma.hbm_to_vmem [thread:$0]  %s275, 2048, %s277, [#allocation10], 128, 128, 8
        $region20: #{tpu_custom_call.1} parent=11 // pred_fallthru
          _
        // Predicated region
        $region21: #{tpu_custom_call.1} parent=11 // pred_check
          %p283 = pneg %p137
        $region22: #{tpu_custom_call.1} parent=11 // pred_check_branch
          %285 = sbr.rel (%p283) target = $region24
        $region23: #{tpu_custom_call.1} parent=11 // pred_region
          %287 = vsyncadd [#allocation10], 0
          %s289 = sshll.u32 %s4, 4
          %s290 = int_to_ptr.hbm [resolvable:$true] %s289
          %s291 = sshll.u32 [#allocation11], 4
          %s292 = int_to_ptr.vmem [resolvable:$true] %s291
          %294 = dma.hbm_to_vmem [thread:$0]  %s290, 16, %s292, [#allocation10]
        $region24: #{tpu_custom_call.1} parent=11 // pred_fallthru
          _
        // Predicated region
        $region25: #{tpu_custom_call.1} parent=11 // pred_check
          %p295 = pneg %p158
        $region26: #{tpu_custom_call.1} parent=11 // pred_check_branch
          %297 = sbr.rel (%p295) target = $region28
        $region27: #{tpu_custom_call.1} parent=11 // pred_region
          %299 = vsyncadd [#allocation13], 0
          %s300 = sshll.u32 %s5, 4
          %s301 = int_to_ptr.hbm [resolvable:$true] %s300
          %s302 = sshll.u32 [#allocation12], 4
          %s303 = int_to_ptr.vmem [resolvable:$true] %s302
          %308 = dma.hbm_to_vmem [thread:$0]  %s301, 2048, %s303, [#allocation13], 128, 128, 8
        $region28: #{tpu_custom_call.1} parent=11 // pred_fallthru
          _
      $region12: #{tpu_custom_call.1} parent=5 // pred_fallthru
        _
      %p309 = scmp.lt.s32.totalorder %s22, 4
      // Predicated region
      $region29: #{tpu_custom_call.1} parent=5 // pred_check
        %p310 = pneg %p309
      $region30: #{tpu_custom_call.1} parent=5 // pred_check_branch
        %312 = sbr.rel (%p310) target = $region32
      $region31: #{tpu_custom_call.1} parent=5 // pred_region
        // Predicated region
        $region33: #{tpu_custom_call.1} parent=31 // pred_check
          %p313 = pneg %p42
        $region34: #{tpu_custom_call.1} parent=31 // pred_check_branch
          %315 = sbr.rel (%p313) target = $region36
        $region35: #{tpu_custom_call.1} parent=31 // pred_region
          %p316 = scmp.lt.s32.totalorder %s22, 3
          %s317 = scalar_select %p316, %s22, 3
          %s318 = smul.addr %s317, 8
          %s319 = scalar_lea.vmem %s0, %s318
        $region36: #{tpu_custom_call.1} parent=31 // pred_fallthru
          _
        // Predicated region
        $region37: #{tpu_custom_call.1} parent=31 // pred_check
          %p320 = pneg %p68
        $region38: #{tpu_custom_call.1} parent=31 // pred_check_branch
          %322 = sbr.rel (%p320) target = $region40
        $region39: #{tpu_custom_call.1} parent=31 // pred_region
          %p323 = scmp.lt.s32.totalorder %s22, 3
          %s324 = scalar_select %p323, %s22, 3
          %s325 = smul.addr %s324, 8
          %s326 = scalar_lea.vmem %s1, %s325
        $region40: #{tpu_custom_call.1} parent=31 // pred_fallthru
          _
      $region32: #{tpu_custom_call.1} parent=5 // pred_fallthru
        _
      %p327 = scmp.le.s32.totalorder 1, %s22
      %p328 = scmp.lt.s32.totalorder %s22, 5
      %p329 = pnand %p327, %p328
      %p330 = pneg %p329
      // Predicated region
      $region41: #{tpu_custom_call.1} parent=5 // pred_check
        _
      $region42: #{tpu_custom_call.1} parent=5 // pred_check_branch
        %332 = sbr.rel (%p329) target = $region44
      $region43: #{tpu_custom_call.1} parent=5 // pred_region
        %s333 = ssub.s32 %s22, 1
        // Predicated region
        $region45: #{tpu_custom_call.1} parent=43 // pred_check
          %p334 = pneg %p95
        $region46: #{tpu_custom_call.1} parent=43 // pred_check_branch
          %336 = sbr.rel (%p334) target = $region48
        $region47: #{tpu_custom_call.1} parent=43 // pred_region
          %338 = dma.done [#allocation7], 16
        $region48: #{tpu_custom_call.1} parent=43 // pred_fallthru
          _
        // Predicated region
        $region49: #{tpu_custom_call.1} parent=43 // pred_check
          %p339 = pneg %p116
        $region50: #{tpu_custom_call.1} parent=43 // pred_check_branch
          %341 = sbr.rel (%p339) target = $region52
        $region51: #{tpu_custom_call.1} parent=43 // pred_region
          %343 = dma.done [#allocation10], 2048
        $region52: #{tpu_custom_call.1} parent=43 // pred_fallthru
          _
        // Predicated region
        $region53: #{tpu_custom_call.1} parent=43 // pred_check
          %p344 = pneg %p137
        $region54: #{tpu_custom_call.1} parent=43 // pred_check_branch
          %346 = sbr.rel (%p344) target = $region56
        $region55: #{tpu_custom_call.1} parent=43 // pred_region
          %348 = dma.done [#allocation10], 16
        $region56: #{tpu_custom_call.1} parent=43 // pred_fallthru
          _
        // Predicated region
        $region57: #{tpu_custom_call.1} parent=43 // pred_check
          %p349 = pneg %p158
        $region58: #{tpu_custom_call.1} parent=43 // pred_check_branch
          %351 = sbr.rel (%p349) target = $region60
        $region59: #{tpu_custom_call.1} parent=43 // pred_region
          %353 = dma.done [#allocation13], 2048
        $region60: #{tpu_custom_call.1} parent=43 // pred_fallthru
          _
        %p354 = scmp.lt.s32.totalorder %s27, 3
        %s355 = scalar_select %p354, %s27, 3
        %s356 = smul.addr %s355, 8
        %s357 = scalar_lea.vmem %s0, %s356
        %p358 = pneg %p48
        %p359 = pneg %p45
        %p360 = scmp.lt.s32.totalorder %s27, 3
        %s361 = scalar_select %p360, %s27, 3
        %s362 = smul.addr %s361, 8
        %s363 = scalar_lea.vmem %s1, %s362
        %p364 = pneg %p74
        %p365 = pneg %p71
        %p366 = pneg %p95
        %p367 = pneg %p92
        %p368 = pneg %p116
        %p369 = pneg %p113
        %p370 = pneg %p137
        %p371 = pneg %p134
        %p372 = pneg %p158
        %p373 = pneg %p155
        %p374 = pneg %p179
        %p375 = pneg %p176
        %p376 = pneg %p200
        %p377 = pneg %p197
        %p378 = pneg %p221
        %p379 = pneg %p218
        %p380 = pneg %p242
        %p381 = pneg %p239
        %p382 = scmp.lt.s32.totalorder %s27, 3
        %s383 = scalar_select %p382, %s27, 3
        %s384 = smul.addr %s383, 8
        %s385 = scalar_lea.vmem %s0, %s384
        %p386 = scmp.lt.s32.totalorder %s27, 3
        %s387 = scalar_select %p386, %s27, 3
        %s388 = smul.addr %s387, 8
        %s389 = scalar_lea.vmem %s1, %s388
        %p390 = scmp.eq.s32.totalorder %s27, 0
        // Predicated region
        $region61: #{tpu_custom_call.1} parent=43 // pred_check
          %p391 = pneg %p390
        $region62: #{tpu_custom_call.1} parent=43 // pred_check_branch
          %393 = sbr.rel (%p391) target = $region64
        $region63: #{tpu_custom_call.1} parent=43 // pred_region
          %394 = vst [vmem:[#allocation2] sm:$0xff] 0.0
          %395 = vst [vmem:[#allocation2 + $0x8] sm:$0xff] 0.0
          %396 = vst [vmem:[#allocation2 + $0x10] sm:$0xff] 0.0
          %397 = vst [vmem:[#allocation2 + $0x18] sm:$0xff] 0.0
          %398 = vst [vmem:[#allocation2 + $0x20] sm:$0xff] 0.0
          %399 = vst [vmem:[#allocation2 + $0x28] sm:$0xff] 0.0
          %400 = vst [vmem:[#allocation2 + $0x30] sm:$0xff] 0.0
          %401 = vst [vmem:[#allocation2 + $0x38] sm:$0xff] 0.0
          %402 = vst [vmem:[#allocation2 + $0x40] sm:$0xff] 0.0
          %403 = vst [vmem:[#allocation2 + $0x48] sm:$0xff] 0.0
          %404 = vst [vmem:[#allocation2 + $0x50] sm:$0xff] 0.0
          %405 = vst [vmem:[#allocation2 + $0x58] sm:$0xff] 0.0
          %406 = vst [vmem:[#allocation2 + $0x60] sm:$0xff] 0.0
          %407 = vst [vmem:[#allocation2 + $0x68] sm:$0xff] 0.0
          %408 = vst [vmem:[#allocation2 + $0x70] sm:$0xff] 0.0
          %409 = vst [vmem:[#allocation2 + $0x78] sm:$0xff] 0.0
          %410 = vst [vmem:[#allocation3] sm:$0x1] 0.0
          %411 = vst [vmem:[#allocation4] sm:$0xff] 0.0
          %412 = vst [vmem:[#allocation4 + $0x8] sm:$0xff] 0.0
          %413 = vst [vmem:[#allocation4 + $0x10] sm:$0xff] 0.0
          %414 = vst [vmem:[#allocation4 + $0x18] sm:$0xff] 0.0
          %415 = vst [vmem:[#allocation4 + $0x20] sm:$0xff] 0.0
          %416 = vst [vmem:[#allocation4 + $0x28] sm:$0xff] 0.0
          %417 = vst [vmem:[#allocation4 + $0x30] sm:$0xff] 0.0
          %418 = vst [vmem:[#allocation4 + $0x38] sm:$0xff] 0.0
          %419 = vst [vmem:[#allocation4 + $0x40] sm:$0xff] 0.0
          %420 = vst [vmem:[#allocation4 + $0x48] sm:$0xff] 0.0
          %421 = vst [vmem:[#allocation4 + $0x50] sm:$0xff] 0.0
          %422 = vst [vmem:[#allocation4 + $0x58] sm:$0xff] 0.0
          %423 = vst [vmem:[#allocation4 + $0x60] sm:$0xff] 0.0
          %424 = vst [vmem:[#allocation4 + $0x68] sm:$0xff] 0.0
          %425 = vst [vmem:[#allocation4 + $0x70] sm:$0xff] 0.0
          %426 = vst [vmem:[#allocation4 + $0x78] sm:$0xff] 0.0
          %427 = vst [vmem:[#allocation5] sm:$0x1] 0.0
        $region64: #{tpu_custom_call.1} parent=43 // pred_fallthru
          _
        %v428 = vld [vmem:[%s385] sm:$0xff]
        %v429 = vld [vmem:[%s389] sm:$0xff]
        %v430 = vlaneseq
        %v431 = vshrl.u32 %v430, 7
        %s432 = smul.u32 %s27, 8
        %v433 = vstv %s432
        %v434 = vadd.s32 %v431, %v433
        %vm435 = vcmp.lt.s32.totalorder %v434, 28
        %v436 = vsel %vm435, 1, 0
        %vm437 = vcmp.eq.s32.totalorder %v436, 1
        %v438 = vsel %vm437, %v428, 0.0
        %v439 = vsel %vm437, %v429, 0.0
        %v440 = vld [vmem:[#allocation2] sm:$0xff]
        %v441 = vld [vmem:[#allocation2 + $0x8] sm:$0xff]
        %v442 = vld [vmem:[#allocation2 + $0x10] sm:$0xff]
        %v443 = vld [vmem:[#allocation2 + $0x18] sm:$0xff]
        %v444 = vld [vmem:[#allocation2 + $0x20] sm:$0xff]
        %v445 = vld [vmem:[#allocation2 + $0x28] sm:$0xff]
        %v446 = vld [vmem:[#allocation2 + $0x30] sm:$0xff]
        %v447 = vld [vmem:[#allocation2 + $0x38] sm:$0xff]
        %v448 = vld [vmem:[#allocation2 + $0x40] sm:$0xff]
        %v449 = vld [vmem:[#allocation2 + $0x48] sm:$0xff]
        %v450 = vld [vmem:[#allocation2 + $0x50] sm:$0xff]
        %v451 = vld [vmem:[#allocation2 + $0x58] sm:$0xff]
        %v452 = vld [vmem:[#allocation2 + $0x60] sm:$0xff]
        %v453 = vld [vmem:[#allocation2 + $0x68] sm:$0xff]
        %v454 = vld [vmem:[#allocation2 + $0x70] sm:$0xff]
        %v455 = vld [vmem:[#allocation2 + $0x78] sm:$0xff]
        %456 = vxpose.xlu0.b32.start [1/16] %v438, 128
        %457 = vxpose.xlu0.b32.cont [2/16] 0.0, 128
        %458 = vxpose.xlu0.b32.cont [3/16] 0.0, 128
        %459 = vxpose.xlu0.b32.cont [4/16] 0.0, 128
        %460 = vxpose.xlu0.b32.cont [5/16] 0.0, 128
        %461 = vxpose.xlu0.b32.cont [6/16] 0.0, 128
        %462 = vxpose.xlu0.b32.cont [7/16] 0.0, 128
        %463 = vxpose.xlu0.b32.cont [8/16] 0.0, 128
        %464 = vxpose.xlu0.b32.cont [9/16] 0.0, 128
        %465 = vxpose.xlu0.b32.cont [10/16] 0.0, 128
        %466 = vxpose.xlu0.b32.cont [11/16] 0.0, 128
        %467 = vxpose.xlu0.b32.cont [12/16] 0.0, 128
        %468 = vxpose.xlu0.b32.cont [13/16] 0.0, 128
        %469 = vxpose.xlu0.b32.cont [14/16] 0.0, 128
        %470 = vxpose.xlu0.b32.cont [15/16] 0.0, 128
        %471 = vxpose.xlu0.b32.end [16/16] 0.0, 128
        %v472 = vpop.trf.xlu0
        %v473 = vpop.trf.xlu0
        %v474 = vpop.trf.xlu0
        %v475 = vpop.trf.xlu0
        %v476 = vpop.trf.xlu0
        %v477 = vpop.trf.xlu0
        %v478 = vpop.trf.xlu0
        %v479 = vpop.trf.xlu0
        %v480 = vpop.trf.xlu0
        %v481 = vpop.trf.xlu0
        %v482 = vpop.trf.xlu0
        %v483 = vpop.trf.xlu0
        %v484 = vpop.trf.xlu0
        %v485 = vpop.trf.xlu0
        %v486 = vpop.trf.xlu0
        %v487 = vpop.trf.xlu0
        %vm488 = vcmask 64512
        %v490 = vsel %vm488, %v472, 0
        %v493 = vsel %vm488, %v473, 0
        %v496 = vsel %vm488, %v474, 0
        %v499 = vsel %vm488, %v475, 0
        %v502 = vsel %vm488, %v476, 0
        %v505 = vsel %vm488, %v477, 0
        %v508 = vsel %vm488, %v478, 0
        %v511 = vsel %vm488, %v479, 0
        %v514 = vsel %vm488, %v480, 0
        %v517 = vsel %vm488, %v481, 0
        %v520 = vsel %vm488, %v482, 0
        %v523 = vsel %vm488, %v483, 0
        %v526 = vsel %vm488, %v484, 0
        %v529 = vsel %vm488, %v485, 0
        %v532 = vsel %vm488, %v486, 0
        %v535 = vsel %vm488, %v487, 0
        %537 = vmatpush.msra.mxu0 0.0
        %538 = vmatpush.msra.mxu0 0.0
        %539 = vmatpush.msra.mxu0 0.0
        %540 = vmatpush.msra.mxu0 0.0
        %541 = vmatpush.msra.mxu0 0.0
        %542 = vmatpush.msra.mxu0 0.0
        %543 = vmatpush.msra.mxu0 0.0
        %544 = vmatpush.msra.mxu0 0.0
        %545 = vmatpush.msra.mxu0 0.0
        %546 = vmatpush.msra.mxu0 0.0
        %547 = vmatpush.msra.mxu0 0.0
        %548 = vmatpush.msra.mxu0 0.0
        %549 = vmatpush.msra.mxu0 0.0
        %550 = vmatpush.msra.mxu0 0.0
        %551 = vmatpush.msra.mxu0 0.0
        %552 = vmatpush.msra.mxu0 %v438
        %553 = vmatmul.f32.gmra.mxu0 %v490
        %v554 = vpop.f32.mrf.mxu0
        %v555 = vadd.f32 0.0, %v554
        %556 = vmatmul.f32.gmra.mxu0 %v493
        %v557 = vpop.f32.mrf.mxu0
        %v558 = vadd.f32 0.0, %v557
        %559 = vmatmul.f32.gmra.mxu0 %v496
        %v560 = vpop.f32.mrf.mxu0
        %v561 = vadd.f32 0.0, %v560
        %562 = vmatmul.f32.gmra.mxu0 %v499
        %v563 = vpop.f32.mrf.mxu0
        %v564 = vadd.f32 0.0, %v563
        %565 = vmatmul.f32.gmra.mxu0 %v502
        %v566 = vpop.f32.mrf.mxu0
        %v567 = vadd.f32 0.0, %v566
        %568 = vmatmul.f32.gmra.mxu0 %v505
        %v569 = vpop.f32.mrf.mxu0
        %v570 = vadd.f32 0.0, %v569
        %571 = vmatmul.f32.gmra.mxu0 %v508
        %v572 = vpop.f32.mrf.mxu0
        %v573 = vadd.f32 0.0, %v572
        %574 = vmatmul.f32.gmra.mxu0 %v511
        %v575 = vpop.f32.mrf.mxu0
        %v576 = vadd.f32 0.0, %v575
        %577 = vmatmul.f32.gmra.mxu0 %v514
        %v578 = vpop.f32.mrf.mxu0
        %v579 = vadd.f32 0.0, %v578
        %580 = vmatmul.f32.gmra.mxu0 %v517
        %v581 = vpop.f32.mrf.mxu0
        %v582 = vadd.f32 0.0, %v581
        %583 = vmatmul.f32.gmra.mxu0 %v520
        %v584 = vpop.f32.mrf.mxu0
        %v585 = vadd.f32 0.0, %v584
        %586 = vmatmul.f32.gmra.mxu0 %v523
        %v587 = vpop.f32.mrf.mxu0
        %v588 = vadd.f32 0.0, %v587
        %589 = vmatmul.f32.gmra.mxu0 %v526
        %v590 = vpop.f32.mrf.mxu0
        %v591 = vadd.f32 0.0, %v590
        %592 = vmatmul.f32.gmra.mxu0 %v529
        %v593 = vpop.f32.mrf.mxu0
        %v594 = vadd.f32 0.0, %v593
        %595 = vmatmul.f32.gmra.mxu0 %v532
        %v596 = vpop.f32.mrf.mxu0
        %v597 = vadd.f32 0.0, %v596
        %598 = vmatmul.f32.gmra.mxu0 %v535
        %v599 = vpop.f32.mrf.mxu0
        %v600 = vadd.f32 0.0, %v599
        %601 = vdwg.mxu0
        %v602 = vadd.f32 %v440, %v555
        %v603 = vadd.f32 %v441, %v558
        %v604 = vadd.f32 %v442, %v561
        %v605 = vadd.f32 %v443, %v564
        %v606 = vadd.f32 %v444, %v567
        %v607 = vadd.f32 %v445, %v570
        %v608 = vadd.f32 %v446, %v573
        %v609 = vadd.f32 %v447, %v576
        %v610 = vadd.f32 %v448, %v579
        %v611 = vadd.f32 %v449, %v582
        %v612 = vadd.f32 %v450, %v585
        %v613 = vadd.f32 %v451, %v588
        %v614 = vadd.f32 %v452, %v591
        %v615 = vadd.f32 %v453, %v594
        %v616 = vadd.f32 %v454, %v597
        %v617 = vadd.f32 %v455, %v600
        %618 = vst [vmem:[#allocation2] sm:$0xff] %v602
        %619 = vst [vmem:[#allocation2 + $0x8] sm:$0xff] %v603
        %620 = vst [vmem:[#allocation2 + $0x10] sm:$0xff] %v604
        %621 = vst [vmem:[#allocation2 + $0x18] sm:$0xff] %v605
        %622 = vst [vmem:[#allocation2 + $0x20] sm:$0xff] %v606
        %623 = vst [vmem:[#allocation2 + $0x28] sm:$0xff] %v607
        %624 = vst [vmem:[#allocation2 + $0x30] sm:$0xff] %v608
        %625 = vst [vmem:[#allocation2 + $0x38] sm:$0xff] %v609
        %626 = vst [vmem:[#allocation2 + $0x40] sm:$0xff] %v610
        %627 = vst [vmem:[#allocation2 + $0x48] sm:$0xff] %v611
        %628 = vst [vmem:[#allocation2 + $0x50] sm:$0xff] %v612
        %629 = vst [vmem:[#allocation2 + $0x58] sm:$0xff] %v613
        %630 = vst [vmem:[#allocation2 + $0x60] sm:$0xff] %v614
        %631 = vst [vmem:[#allocation2 + $0x68] sm:$0xff] %v615
        %632 = vst [vmem:[#allocation2 + $0x70] sm:$0xff] %v616
        %633 = vst [vmem:[#allocation2 + $0x78] sm:$0xff] %v617
        %v634 = vld [vmem:[#allocation4] sm:$0xff]
        %v635 = vld [vmem:[#allocation4 + $0x8] sm:$0xff]
        %v636 = vld [vmem:[#allocation4 + $0x10] sm:$0xff]
        %v637 = vld [vmem:[#allocation4 + $0x18] sm:$0xff]
        %v638 = vld [vmem:[#allocation4 + $0x20] sm:$0xff]
        %v639 = vld [vmem:[#allocation4 + $0x28] sm:$0xff]
        %v640 = vld [vmem:[#allocation4 + $0x30] sm:$0xff]
        %v641 = vld [vmem:[#allocation4 + $0x38] sm:$0xff]
        %v642 = vld [vmem:[#allocation4 + $0x40] sm:$0xff]
        %v643 = vld [vmem:[#allocation4 + $0x48] sm:$0xff]
        %v644 = vld [vmem:[#allocation4 + $0x50] sm:$0xff]
        %v645 = vld [vmem:[#allocation4 + $0x58] sm:$0xff]
        %v646 = vld [vmem:[#allocation4 + $0x60] sm:$0xff]
        %v647 = vld [vmem:[#allocation4 + $0x68] sm:$0xff]
        %v648 = vld [vmem:[#allocation4 + $0x70] sm:$0xff]
        %v649 = vld [vmem:[#allocation4 + $0x78] sm:$0xff]
        %650 = vxpose.xlu0.b32.start [1/16] %v439, 128
        %651 = vxpose.xlu0.b32.cont [2/16] 0.0, 128
        %652 = vxpose.xlu0.b32.cont [3/16] 0.0, 128
        %653 = vxpose.xlu0.b32.cont [4/16] 0.0, 128
        %654 = vxpose.xlu0.b32.cont [5/16] 0.0, 128
        %655 = vxpose.xlu0.b32.cont [6/16] 0.0, 128
        %656 = vxpose.xlu0.b32.cont [7/16] 0.0, 128
        %657 = vxpose.xlu0.b32.cont [8/16] 0.0, 128
        %658 = vxpose.xlu0.b32.cont [9/16] 0.0, 128
        %659 = vxpose.xlu0.b32.cont [10/16] 0.0, 128
        %660 = vxpose.xlu0.b32.cont [11/16] 0.0, 128
        %661 = vxpose.xlu0.b32.cont [12/16] 0.0, 128
        %662 = vxpose.xlu0.b32.cont [13/16] 0.0, 128
        %663 = vxpose.xlu0.b32.cont [14/16] 0.0, 128
        %664 = vxpose.xlu0.b32.cont [15/16] 0.0, 128
        %665 = vxpose.xlu0.b32.end [16/16] 0.0, 128
        %v666 = vpop.trf.xlu0
        %v667 = vpop.trf.xlu0
        %v668 = vpop.trf.xlu0
        %v669 = vpop.trf.xlu0
        %v670 = vpop.trf.xlu0
        %v671 = vpop.trf.xlu0
        %v672 = vpop.trf.xlu0
        %v673 = vpop.trf.xlu0
        %v674 = vpop.trf.xlu0
        %v675 = vpop.trf.xlu0
        %v676 = vpop.trf.xlu0
        %v677 = vpop.trf.xlu0
        %v678 = vpop.trf.xlu0
        %v679 = vpop.trf.xlu0
        %v680 = vpop.trf.xlu0
        %v681 = vpop.trf.xlu0
        %v683 = vsel %vm488, %v666, 0
        %v686 = vsel %vm488, %v667, 0
        %v689 = vsel %vm488, %v668, 0
        %v692 = vsel %vm488, %v669, 0
        %v695 = vsel %vm488, %v670, 0
        %v698 = vsel %vm488, %v671, 0
        %v701 = vsel %vm488, %v672, 0
        %v704 = vsel %vm488, %v673, 0
        %v707 = vsel %vm488, %v674, 0
        %v710 = vsel %vm488, %v675, 0
        %v713 = vsel %vm488, %v676, 0
        %v716 = vsel %vm488, %v677, 0
        %v719 = vsel %vm488, %v678, 0
        %v722 = vsel %vm488, %v679, 0
        %v725 = vsel %vm488, %v680, 0
        %v728 = vsel %vm488, %v681, 0
        %730 = vmatpush.msra.mxu0 0.0
        %731 = vmatpush.msra.mxu0 0.0
        %732 = vmatpush.msra.mxu0 0.0
        %733 = vmatpush.msra.mxu0 0.0
        %734 = vmatpush.msra.mxu0 0.0
        %735 = vmatpush.msra.mxu0 0.0
        %736 = vmatpush.msra.mxu0 0.0
        %737 = vmatpush.msra.mxu0 0.0
        %738 = vmatpush.msra.mxu0 0.0
        %739 = vmatpush.msra.mxu0 0.0
        %740 = vmatpush.msra.mxu0 0.0
        %741 = vmatpush.msra.mxu0 0.0
        %742 = vmatpush.msra.mxu0 0.0
        %743 = vmatpush.msra.mxu0 0.0
        %744 = vmatpush.msra.mxu0 0.0
        %745 = vmatpush.msra.mxu0 %v439
        %746 = vmatmul.f32.gmra.mxu0 %v683
        %v747 = vpop.f32.mrf.mxu0
        %v748 = vadd.f32 0.0, %v747
        %749 = vmatmul.f32.gmra.mxu0 %v686
        %v750 = vpop.f32.mrf.mxu0
        %v751 = vadd.f32 0.0, %v750
        %752 = vmatmul.f32.gmra.mxu0 %v689
        %v753 = vpop.f32.mrf.mxu0
        %v754 = vadd.f32 0.0, %v753
        %755 = vmatmul.f32.gmra.mxu0 %v692
        %v756 = vpop.f32.mrf.mxu0
        %v757 = vadd.f32 0.0, %v756
        %758 = vmatmul.f32.gmra.mxu0 %v695
        %v759 = vpop.f32.mrf.mxu0
        %v760 = vadd.f32 0.0, %v759
        %761 = vmatmul.f32.gmra.mxu0 %v698
        %v762 = vpop.f32.mrf.mxu0
        %v763 = vadd.f32 0.0, %v762
        %764 = vmatmul.f32.gmra.mxu0 %v701
        %v765 = vpop.f32.mrf.mxu0
        %v766 = vadd.f32 0.0, %v765
        %767 = vmatmul.f32.gmra.mxu0 %v704
        %v768 = vpop.f32.mrf.mxu0
        %v769 = vadd.f32 0.0, %v768
        %770 = vmatmul.f32.gmra.mxu0 %v707
        %v771 = vpop.f32.mrf.mxu0
        %v772 = vadd.f32 0.0, %v771
        %773 = vmatmul.f32.gmra.mxu0 %v710
        %v774 = vpop.f32.mrf.mxu0
        %v775 = vadd.f32 0.0, %v774
        %776 = vmatmul.f32.gmra.mxu0 %v713
        %v777 = vpop.f32.mrf.mxu0
        %v778 = vadd.f32 0.0, %v777
        %779 = vmatmul.f32.gmra.mxu0 %v716
        %v780 = vpop.f32.mrf.mxu0
        %v781 = vadd.f32 0.0, %v780
        %782 = vmatmul.f32.gmra.mxu0 %v719
        %v783 = vpop.f32.mrf.mxu0
        %v784 = vadd.f32 0.0, %v783
        %785 = vmatmul.f32.gmra.mxu0 %v722
        %v786 = vpop.f32.mrf.mxu0
        %v787 = vadd.f32 0.0, %v786
        %788 = vmatmul.f32.gmra.mxu0 %v725
        %v789 = vpop.f32.mrf.mxu0
        %v790 = vadd.f32 0.0, %v789
        %791 = vmatmul.f32.gmra.mxu0 %v728
        %v792 = vpop.f32.mrf.mxu0
        %v793 = vadd.f32 0.0, %v792
        %794 = vdwg.mxu0
        %v795 = vadd.f32 %v634, %v748
        %v796 = vadd.f32 %v635, %v751
        %v797 = vadd.f32 %v636, %v754
        %v798 = vadd.f32 %v637, %v757
        %v799 = vadd.f32 %v638, %v760
        %v800 = vadd.f32 %v639, %v763
        %v801 = vadd.f32 %v640, %v766
        %v802 = vadd.f32 %v641, %v769
        %v803 = vadd.f32 %v642, %v772
        %v804 = vadd.f32 %v643, %v775
        %v805 = vadd.f32 %v644, %v778
        %v806 = vadd.f32 %v645, %v781
        %v807 = vadd.f32 %v646, %v784
        %v808 = vadd.f32 %v647, %v787
        %v809 = vadd.f32 %v648, %v790
        %v810 = vadd.f32 %v649, %v793
        %811 = vst [vmem:[#allocation4] sm:$0xff] %v795
        %812 = vst [vmem:[#allocation4 + $0x8] sm:$0xff] %v796
        %813 = vst [vmem:[#allocation4 + $0x10] sm:$0xff] %v797
        %814 = vst [vmem:[#allocation4 + $0x18] sm:$0xff] %v798
        %815 = vst [vmem:[#allocation4 + $0x20] sm:$0xff] %v799
        %816 = vst [vmem:[#allocation4 + $0x28] sm:$0xff] %v800
        %817 = vst [vmem:[#allocation4 + $0x30] sm:$0xff] %v801
        %818 = vst [vmem:[#allocation4 + $0x38] sm:$0xff] %v802
        %819 = vst [vmem:[#allocation4 + $0x40] sm:$0xff] %v803
        %820 = vst [vmem:[#allocation4 + $0x48] sm:$0xff] %v804
        %821 = vst [vmem:[#allocation4 + $0x50] sm:$0xff] %v805
        %822 = vst [vmem:[#allocation4 + $0x58] sm:$0xff] %v806
        %823 = vst [vmem:[#allocation4 + $0x60] sm:$0xff] %v807
        %824 = vst [vmem:[#allocation4 + $0x68] sm:$0xff] %v808
        %825 = vst [vmem:[#allocation4 + $0x70] sm:$0xff] %v809
        %826 = vst [vmem:[#allocation4 + $0x78] sm:$0xff] %v810
        %v827 = vld [vmem:[#allocation3] sm:$0x1]
        %v828 = vrot.slane %v438, 4
        %v829 = vadd.f32 %v438, %v828
        %v830 = vrot.slane %v829, 2
        %v831 = vadd.f32 %v829, %v830
        %v832 = vrot.slane %v831, 1
        %v833 = vadd.f32 %v831, %v832
        %v834 = vadd.f32 %v827, %v833
        %835 = vst [vmem:[#allocation3] sm:$0x1] %v834
        %v836 = vld [vmem:[#allocation5] sm:$0x1]
        %v837 = vrot.slane %v439, 4
        %v838 = vadd.f32 %v439, %v837
        %v839 = vrot.slane %v838, 2
        %v840 = vadd.f32 %v838, %v839
        %v841 = vrot.slane %v840, 1
        %v842 = vadd.f32 %v840, %v841
        %v843 = vadd.f32 %v836, %v842
        %844 = vst [vmem:[#allocation5] sm:$0x1] %v843
        %p845 = scmp.eq.s32.totalorder %s27, 3
        // Predicated region
        $region65: #{tpu_custom_call.1} parent=43 // pred_check
          %p846 = pneg %p845
        $region66: #{tpu_custom_call.1} parent=43 // pred_check_branch
          %848 = sbr.rel (%p846) target = $region68
        $region67: #{tpu_custom_call.1} parent=43 // pred_region
          %v849 = vld [vmem:[#allocation3] sm:$0x1]
          %v850 = vmul.f32 %v849, 0.035714287
          %v851 = vld [vmem:[#allocation6] sm:$0x1]
          %v852 = vmul.f32 %v851, 0.01
          %v853 = vmul.f32 %v850, 0.99
          %v854 = vadd.f32 %v852, %v853
          %855 = vst [vmem:[#allocation14] sm:$0x1] %v854
          %v856 = vsub.f32 %v850, %v854
          %v858 = vperm.slane %v850, 0
          %v861 = vperm.slane %v856, 0
          %v863 = vld [vmem:[#allocation2] sm:$0xff]
          %v864 = vld [vmem:[#allocation2 + $0x8] sm:$0xff]
          %v865 = vld [vmem:[#allocation2 + $0x10] sm:$0xff]
          %v866 = vld [vmem:[#allocation2 + $0x18] sm:$0xff]
          %v867 = vld [vmem:[#allocation2 + $0x20] sm:$0xff]
          %v868 = vld [vmem:[#allocation2 + $0x28] sm:$0xff]
          %v869 = vld [vmem:[#allocation2 + $0x30] sm:$0xff]
          %v870 = vld [vmem:[#allocation2 + $0x38] sm:$0xff]
          %v871 = vld [vmem:[#allocation2 + $0x40] sm:$0xff]
          %v872 = vld [vmem:[#allocation2 + $0x48] sm:$0xff]
          %v873 = vld [vmem:[#allocation2 + $0x50] sm:$0xff]
          %v874 = vld [vmem:[#allocation2 + $0x58] sm:$0xff]
          %v875 = vld [vmem:[#allocation2 + $0x60] sm:$0xff]
          %v876 = vld [vmem:[#allocation2 + $0x68] sm:$0xff]
          %v877 = vld [vmem:[#allocation2 + $0x70] sm:$0xff]
          %v878 = vld [vmem:[#allocation2 + $0x78] sm:$0xff]
          %879 = vxpose.xlu0.b32.start [1/16] %v861, 128
          %880 = vxpose.xlu0.b32.cont [2/16] %v861, 128
          %881 = vxpose.xlu0.b32.cont [3/16] %v861, 128
          %882 = vxpose.xlu0.b32.cont [4/16] %v861, 128
          %883 = vxpose.xlu0.b32.cont [5/16] %v861, 128
          %884 = vxpose.xlu0.b32.cont [6/16] %v861, 128
          %885 = vxpose.xlu0.b32.cont [7/16] %v861, 128
          %886 = vxpose.xlu0.b32.cont [8/16] %v861, 128
          %887 = vxpose.xlu0.b32.cont [9/16] %v861, 128
          %888 = vxpose.xlu0.b32.cont [10/16] %v861, 128
          %889 = vxpose.xlu0.b32.cont [11/16] %v861, 128
          %890 = vxpose.xlu0.b32.cont [12/16] %v861, 128
          %891 = vxpose.xlu0.b32.cont [13/16] %v861, 128
          %892 = vxpose.xlu0.b32.cont [14/16] %v861, 128
          %893 = vxpose.xlu0.b32.cont [15/16] %v861, 128
          %894 = vxpose.xlu0.b32.end [16/16] %v861, 128
          %v895 = vpop.trf.xlu0
          %v896 = vpop.trf.xlu0
          %v897 = vpop.trf.xlu0
          %v898 = vpop.trf.xlu0
          %v899 = vpop.trf.xlu0
          %v900 = vpop.trf.xlu0
          %v901 = vpop.trf.xlu0
          %v902 = vpop.trf.xlu0
          %v903 = vpop.trf.xlu0
          %v904 = vpop.trf.xlu0
          %v905 = vpop.trf.xlu0
          %v906 = vpop.trf.xlu0
          %v907 = vpop.trf.xlu0
          %v908 = vpop.trf.xlu0
          %v909 = vpop.trf.xlu0
          %v910 = vpop.trf.xlu0
          %v911 = vmul.f32 %v895, %v861
          %v912 = vmul.f32 %v896, %v861
          %v913 = vmul.f32 %v897, %v861
          %v914 = vmul.f32 %v898, %v861
          %v915 = vmul.f32 %v899, %v861
          %v916 = vmul.f32 %v900, %v861
          %v917 = vmul.f32 %v901, %v861
          %v918 = vmul.f32 %v902, %v861
          %v919 = vmul.f32 %v903, %v861
          %v920 = vmul.f32 %v904, %v861
          %v921 = vmul.f32 %v905, %v861
          %v922 = vmul.f32 %v906, %v861
          %v923 = vmul.f32 %v907, %v861
          %v924 = vmul.f32 %v908, %v861
          %v925 = vmul.f32 %v909, %v861
          %v926 = vmul.f32 %v910, %v861
          %927 = vxpose.xlu0.b32.start [1/16] %v858, 128
          %928 = vxpose.xlu0.b32.cont [2/16] %v858, 128
          %929 = vxpose.xlu0.b32.cont [3/16] %v858, 128
          %930 = vxpose.xlu0.b32.cont [4/16] %v858, 128
          %931 = vxpose.xlu0.b32.cont [5/16] %v858, 128
          %932 = vxpose.xlu0.b32.cont [6/16] %v858, 128
          %933 = vxpose.xlu0.b32.cont [7/16] %v858, 128
          %934 = vxpose.xlu0.b32.cont [8/16] %v858, 128
          %935 = vxpose.xlu0.b32.cont [9/16] %v858, 128
          %936 = vxpose.xlu0.b32.cont [10/16] %v858, 128
          %937 = vxpose.xlu0.b32.cont [11/16] %v858, 128
          %938 = vxpose.xlu0.b32.cont [12/16] %v858, 128
          %939 = vxpose.xlu0.b32.cont [13/16] %v858, 128
          %940 = vxpose.xlu0.b32.cont [14/16] %v858, 128
          %941 = vxpose.xlu0.b32.cont [15/16] %v858, 128
          %942 = vxpose.xlu0.b32.end [16/16] %v858, 128
          %v943 = vpop.trf.xlu0
          %v944 = vpop.trf.xlu0
          %v945 = vpop.trf.xlu0
          %v946 = vpop.trf.xlu0
          %v947 = vpop.trf.xlu0
          %v948 = vpop.trf.xlu0
          %v949 = vpop.trf.xlu0
          %v950 = vpop.trf.xlu0
          %v951 = vpop.trf.xlu0
          %v952 = vpop.trf.xlu0
          %v953 = vpop.trf.xlu0
          %v954 = vpop.trf.xlu0
          %v955 = vpop.trf.xlu0
          %v956 = vpop.trf.xlu0
          %v957 = vpop.trf.xlu0
          %v958 = vpop.trf.xlu0
          %v959 = vmul.f32 %v943, %v858
          %v960 = vmul.f32 %v944, %v858
          %v961 = vmul.f32 %v945, %v858
          %v962 = vmul.f32 %v946, %v858
          %v963 = vmul.f32 %v947, %v858
          %v964 = vmul.f32 %v948, %v858
          %v965 = vmul.f32 %v949, %v858
          %v966 = vmul.f32 %v950, %v858
          %v967 = vmul.f32 %v951, %v858
          %v968 = vmul.f32 %v952, %v858
          %v969 = vmul.f32 %v953, %v858
          %v970 = vmul.f32 %v954, %v858
          %v971 = vmul.f32 %v955, %v858
          %v972 = vmul.f32 %v956, %v858
          %v973 = vmul.f32 %v957, %v858
          %v974 = vmul.f32 %v958, %v858
          %v975 = vsub.f32 %v911, %v959
          %v976 = vsub.f32 %v912, %v960
          %v977 = vsub.f32 %v913, %v961
          %v978 = vsub.f32 %v914, %v962
          %v979 = vsub.f32 %v915, %v963
          %v980 = vsub.f32 %v916, %v964
          %v981 = vsub.f32 %v917, %v965
          %v982 = vsub.f32 %v918, %v966
          %v983 = vsub.f32 %v919, %v967
          %v984 = vsub.f32 %v920, %v968
          %v985 = vsub.f32 %v921, %v969
          %v986 = vsub.f32 %v922, %v970
          %v987 = vsub.f32 %v923, %v971
          %v988 = vsub.f32 %v924, %v972
          %v989 = vsub.f32 %v925, %v973
          %v990 = vsub.f32 %v926, %v974
          %v991 = vmul.f32 %v975, 28.0
          %v992 = vmul.f32 %v976, 28.0
          %v993 = vmul.f32 %v977, 28.0
          %v994 = vmul.f32 %v978, 28.0
          %v995 = vmul.f32 %v979, 28.0
          %v996 = vmul.f32 %v980, 28.0
          %v997 = vmul.f32 %v981, 28.0
          %v998 = vmul.f32 %v982, 28.0
          %v999 = vmul.f32 %v983, 28.0
          %v1000 = vmul.f32 %v984, 28.0
          %v1001 = vmul.f32 %v985, 28.0
          %v1002 = vmul.f32 %v986, 28.0
          %v1003 = vmul.f32 %v987, 28.0
          %v1004 = vmul.f32 %v988, 28.0
          %v1005 = vmul.f32 %v989, 28.0
          %v1006 = vmul.f32 %v990, 28.0
          %v1007 = vadd.f32 %v863, %v991
          %v1008 = vadd.f32 %v864, %v992
          %v1009 = vadd.f32 %v865, %v993
          %v1010 = vadd.f32 %v866, %v994
          %v1011 = vadd.f32 %v867, %v995
          %v1012 = vadd.f32 %v868, %v996
          %v1013 = vadd.f32 %v869, %v997
          %v1014 = vadd.f32 %v870, %v998
          %v1015 = vadd.f32 %v871, %v999
          %v1016 = vadd.f32 %v872, %v1000
          %v1017 = vadd.f32 %v873, %v1001
          %v1018 = vadd.f32 %v874, %v1002
          %v1019 = vadd.f32 %v875, %v1003
          %v1020 = vadd.f32 %v876, %v1004
          %v1021 = vadd.f32 %v877, %v1005
          %v1022 = vadd.f32 %v878, %v1006
          %v1023 = vld [vmem:[#allocation9] sm:$0xff]
          %v1024 = vld [vmem:[#allocation9 + $0x8] sm:$0xff]
          %v1025 = vld [vmem:[#allocation9 + $0x10] sm:$0xff]
          %v1026 = vld [vmem:[#allocation9 + $0x18] sm:$0xff]
          %v1027 = vld [vmem:[#allocation9 + $0x20] sm:$0xff]
          %v1028 = vld [vmem:[#allocation9 + $0x28] sm:$0xff]
          %v1029 = vld [vmem:[#allocation9 + $0x30] sm:$0xff]
          %v1030 = vld [vmem:[#allocation9 + $0x38] sm:$0xff]
          %v1031 = vld [vmem:[#allocation9 + $0x40] sm:$0xff]
          %v1032 = vld [vmem:[#allocation9 + $0x48] sm:$0xff]
          %v1033 = vld [vmem:[#allocation9 + $0x50] sm:$0xff]
          %v1034 = vld [vmem:[#allocation9 + $0x58] sm:$0xff]
          %v1035 = vld [vmem:[#allocation9 + $0x60] sm:$0xff]
          %v1036 = vld [vmem:[#allocation9 + $0x68] sm:$0xff]
          %v1037 = vld [vmem:[#allocation9 + $0x70] sm:$0xff]
          %v1038 = vld [vmem:[#allocation9 + $0x78] sm:$0xff]
          %v1039 = vmul.f32 %v1023, 0.01
          %v1040 = vmul.f32 %v1024, 0.01
          %v1041 = vmul.f32 %v1025, 0.01
          %v1042 = vmul.f32 %v1026, 0.01
          %v1043 = vmul.f32 %v1027, 0.01
          %v1044 = vmul.f32 %v1028, 0.01
          %v1045 = vmul.f32 %v1029, 0.01
          %v1046 = vmul.f32 %v1030, 0.01
          %v1047 = vmul.f32 %v1031, 0.01
          %v1048 = vmul.f32 %v1032, 0.01
          %v1049 = vmul.f32 %v1033, 0.01
          %v1050 = vmul.f32 %v1034, 0.01
          %v1051 = vmul.f32 %v1035, 0.01
          %v1052 = vmul.f32 %v1036, 0.01
          %v1053 = vmul.f32 %v1037, 0.01
          %v1054 = vmul.f32 %v1038, 0.01
          %v1055 = vmul.f32 %v1007, 0.035357144
          %v1056 = vmul.f32 %v1008, 0.035357144
          %v1057 = vmul.f32 %v1009, 0.035357144
          %v1058 = vmul.f32 %v1010, 0.035357144
          %v1059 = vmul.f32 %v1011, 0.035357144
          %v1060 = vmul.f32 %v1012, 0.035357144
          %v1061 = vmul.f32 %v1013, 0.035357144
          %v1062 = vmul.f32 %v1014, 0.035357144
          %v1063 = vmul.f32 %v1015, 0.035357144
          %v1064 = vmul.f32 %v1016, 0.035357144
          %v1065 = vmul.f32 %v1017, 0.035357144
          %v1066 = vmul.f32 %v1018, 0.035357144
          %v1067 = vmul.f32 %v1019, 0.035357144
          %v1068 = vmul.f32 %v1020, 0.035357144
          %v1069 = vmul.f32 %v1021, 0.035357144
          %v1070 = vmul.f32 %v1022, 0.035357144
          %v1071 = vadd.f32 %v1039, %v1055
          %v1072 = vadd.f32 %v1040, %v1056
          %v1073 = vadd.f32 %v1041, %v1057
          %v1074 = vadd.f32 %v1042, %v1058
          %v1075 = vadd.f32 %v1043, %v1059
          %v1076 = vadd.f32 %v1044, %v1060
          %v1077 = vadd.f32 %v1045, %v1061
          %v1078 = vadd.f32 %v1046, %v1062
          %v1079 = vadd.f32 %v1047, %v1063
          %v1080 = vadd.f32 %v1048, %v1064
          %v1081 = vadd.f32 %v1049, %v1065
          %v1082 = vadd.f32 %v1050, %v1066
          %v1083 = vadd.f32 %v1051, %v1067
          %v1084 = vadd.f32 %v1052, %v1068
          %v1085 = vadd.f32 %v1053, %v1069
          %v1086 = vadd.f32 %v1054, %v1070
          %1087 = vst [vmem:[#allocation15] sm:$0xff] %v1071
          %1088 = vst [vmem:[#allocation15 + $0x8] sm:$0xff] %v1072
          %1089 = vst [vmem:[#allocation15 + $0x10] sm:$0xff] %v1073
          %1090 = vst [vmem:[#allocation15 + $0x18] sm:$0xff] %v1074
          %1091 = vst [vmem:[#allocation15 + $0x20] sm:$0xff] %v1075
          %1092 = vst [vmem:[#allocation15 + $0x28] sm:$0xff] %v1076
          %1093 = vst [vmem:[#allocation15 + $0x30] sm:$0xff] %v1077
          %1094 = vst [vmem:[#allocation15 + $0x38] sm:$0xff] %v1078
          %1095 = vst [vmem:[#allocation15 + $0x40] sm:$0xff] %v1079
          %1096 = vst [vmem:[#allocation15 + $0x48] sm:$0xff] %v1080
          %1097 = vst [vmem:[#allocation15 + $0x50] sm:$0xff] %v1081
          %1098 = vst [vmem:[#allocation15 + $0x58] sm:$0xff] %v1082
          %1099 = vst [vmem:[#allocation15 + $0x60] sm:$0xff] %v1083
          %1100 = vst [vmem:[#allocation15 + $0x68] sm:$0xff] %v1084
          %1101 = vst [vmem:[#allocation15 + $0x70] sm:$0xff] %v1085
          %1102 = vst [vmem:[#allocation15 + $0x78] sm:$0xff] %v1086
          %v1103 = vld [vmem:[#allocation5] sm:$0x1]
          %v1104 = vmul.f32 %v1103, 0.035714287
          %v1105 = vld [vmem:[#allocation11] sm:$0x1]
          %v1106 = vmul.f32 %v1105, 0.01
          %v1107 = vmul.f32 %v1104, 0.99
          %v1108 = vadd.f32 %v1106, %v1107
          %1109 = vst [vmem:[#allocation17] sm:$0x1] %v1108
          %v1110 = vsub.f32 %v1104, %v1108
          %v1112 = vperm.slane %v1104, 0
          %v1115 = vperm.slane %v1110, 0
          %v1117 = vld [vmem:[#allocation4] sm:$0xff]
          %v1118 = vld [vmem:[#allocation4 + $0x8] sm:$0xff]
          %v1119 = vld [vmem:[#allocation4 + $0x10] sm:$0xff]
          %v1120 = vld [vmem:[#allocation4 + $0x18] sm:$0xff]
          %v1121 = vld [vmem:[#allocation4 + $0x20] sm:$0xff]
          %v1122 = vld [vmem:[#allocation4 + $0x28] sm:$0xff]
          %v1123 = vld [vmem:[#allocation4 + $0x30] sm:$0xff]
          %v1124 = vld [vmem:[#allocation4 + $0x38] sm:$0xff]
          %v1125 = vld [vmem:[#allocation4 + $0x40] sm:$0xff]
          %v1126 = vld [vmem:[#allocation4 + $0x48] sm:$0xff]
          %v1127 = vld [vmem:[#allocation4 + $0x50] sm:$0xff]
          %v1128 = vld [vmem:[#allocation4 + $0x58] sm:$0xff]
          %v1129 = vld [vmem:[#allocation4 + $0x60] sm:$0xff]
          %v1130 = vld [vmem:[#allocation4 + $0x68] sm:$0xff]
          %v1131 = vld [vmem:[#allocation4 + $0x70] sm:$0xff]
          %v1132 = vld [vmem:[#allocation4 + $0x78] sm:$0xff]
          %1133 = vxpose.xlu0.b32.start [1/16] %v1115, 128
          %1134 = vxpose.xlu0.b32.cont [2/16] %v1115, 128
          %1135 = vxpose.xlu0.b32.cont [3/16] %v1115, 128
          %1136 = vxpose.xlu0.b32.cont [4/16] %v1115, 128
          %1137 = vxpose.xlu0.b32.cont [5/16] %v1115, 128
          %1138 = vxpose.xlu0.b32.cont [6/16] %v1115, 128
          %1139 = vxpose.xlu0.b32.cont [7/16] %v1115, 128
          %1140 = vxpose.xlu0.b32.cont [8/16] %v1115, 128
          %1141 = vxpose.xlu0.b32.cont [9/16] %v1115, 128
          %1142 = vxpose.xlu0.b32.cont [10/16] %v1115, 128
          %1143 = vxpose.xlu0.b32.cont [11/16] %v1115, 128
          %1144 = vxpose.xlu0.b32.cont [12/16] %v1115, 128
          %1145 = vxpose.xlu0.b32.cont [13/16] %v1115, 128
          %1146 = vxpose.xlu0.b32.cont [14/16] %v1115, 128
          %1147 = vxpose.xlu0.b32.cont [15/16] %v1115, 128
          %1148 = vxpose.xlu0.b32.end [16/16] %v1115, 128
          %v1149 = vpop.trf.xlu0
          %v1150 = vpop.trf.xlu0
          %v1151 = vpop.trf.xlu0
          %v1152 = vpop.trf.xlu0
          %v1153 = vpop.trf.xlu0
          %v1154 = vpop.trf.xlu0
          %v1155 = vpop.trf.xlu0
          %v1156 = vpop.trf.xlu0
          %v1157 = vpop.trf.xlu0
          %v1158 = vpop.trf.xlu0
          %v1159 = vpop.trf.xlu0
          %v1160 = vpop.trf.xlu0
          %v1161 = vpop.trf.xlu0
          %v1162 = vpop.trf.xlu0
          %v1163 = vpop.trf.xlu0
          %v1164 = vpop.trf.xlu0
          %v1165 = vmul.f32 %v1149, %v1115
          %v1166 = vmul.f32 %v1150, %v1115
          %v1167 = vmul.f32 %v1151, %v1115
          %v1168 = vmul.f32 %v1152, %v1115
          %v1169 = vmul.f32 %v1153, %v1115
          %v1170 = vmul.f32 %v1154, %v1115
          %v1171 = vmul.f32 %v1155, %v1115
          %v1172 = vmul.f32 %v1156, %v1115
          %v1173 = vmul.f32 %v1157, %v1115
          %v1174 = vmul.f32 %v1158, %v1115
          %v1175 = vmul.f32 %v1159, %v1115
          %v1176 = vmul.f32 %v1160, %v1115
          %v1177 = vmul.f32 %v1161, %v1115
          %v1178 = vmul.f32 %v1162, %v1115
          %v1179 = vmul.f32 %v1163, %v1115
          %v1180 = vmul.f32 %v1164, %v1115
          %1181 = vxpose.xlu0.b32.start [1/16] %v1112, 128
          %1182 = vxpose.xlu0.b32.cont [2/16] %v1112, 128
          %1183 = vxpose.xlu0.b32.cont [3/16] %v1112, 128
          %1184 = vxpose.xlu0.b32.cont [4/16] %v1112, 128
          %1185 = vxpose.xlu0.b32.cont [5/16] %v1112, 128
          %1186 = vxpose.xlu0.b32.cont [6/16] %v1112, 128
          %1187 = vxpose.xlu0.b32.cont [7/16] %v1112, 128
          %1188 = vxpose.xlu0.b32.cont [8/16] %v1112, 128
          %1189 = vxpose.xlu0.b32.cont [9/16] %v1112, 128
          %1190 = vxpose.xlu0.b32.cont [10/16] %v1112, 128
          %1191 = vxpose.xlu0.b32.cont [11/16] %v1112, 128
          %1192 = vxpose.xlu0.b32.cont [12/16] %v1112, 128
          %1193 = vxpose.xlu0.b32.cont [13/16] %v1112, 128
          %1194 = vxpose.xlu0.b32.cont [14/16] %v1112, 128
          %1195 = vxpose.xlu0.b32.cont [15/16] %v1112, 128
          %1196 = vxpose.xlu0.b32.end [16/16] %v1112, 128
          %v1197 = vpop.trf.xlu0
          %v1198 = vpop.trf.xlu0
          %v1199 = vpop.trf.xlu0
          %v1200 = vpop.trf.xlu0
          %v1201 = vpop.trf.xlu0
          %v1202 = vpop.trf.xlu0
          %v1203 = vpop.trf.xlu0
          %v1204 = vpop.trf.xlu0
          %v1205 = vpop.trf.xlu0
          %v1206 = vpop.trf.xlu0
          %v1207 = vpop.trf.xlu0
          %v1208 = vpop.trf.xlu0
          %v1209 = vpop.trf.xlu0
          %v1210 = vpop.trf.xlu0
          %v1211 = vpop.trf.xlu0
          %v1212 = vpop.trf.xlu0
          %v1213 = vmul.f32 %v1197, %v1112
          %v1214 = vmul.f32 %v1198, %v1112
          %v1215 = vmul.f32 %v1199, %v1112
          %v1216 = vmul.f32 %v1200, %v1112
          %v1217 = vmul.f32 %v1201, %v1112
          %v1218 = vmul.f32 %v1202, %v1112
          %v1219 = vmul.f32 %v1203, %v1112
          %v1220 = vmul.f32 %v1204, %v1112
          %v1221 = vmul.f32 %v1205, %v1112
          %v1222 = vmul.f32 %v1206, %v1112
          %v1223 = vmul.f32 %v1207, %v1112
          %v1224 = vmul.f32 %v1208, %v1112
          %v1225 = vmul.f32 %v1209, %v1112
          %v1226 = vmul.f32 %v1210, %v1112
          %v1227 = vmul.f32 %v1211, %v1112
          %v1228 = vmul.f32 %v1212, %v1112
          %v1229 = vsub.f32 %v1165, %v1213
          %v1230 = vsub.f32 %v1166, %v1214
          %v1231 = vsub.f32 %v1167, %v1215
          %v1232 = vsub.f32 %v1168, %v1216
          %v1233 = vsub.f32 %v1169, %v1217
          %v1234 = vsub.f32 %v1170, %v1218
          %v1235 = vsub.f32 %v1171, %v1219
          %v1236 = vsub.f32 %v1172, %v1220
          %v1237 = vsub.f32 %v1173, %v1221
          %v1238 = vsub.f32 %v1174, %v1222
          %v1239 = vsub.f32 %v1175, %v1223
          %v1240 = vsub.f32 %v1176, %v1224
          %v1241 = vsub.f32 %v1177, %v1225
          %v1242 = vsub.f32 %v1178, %v1226
          %v1243 = vsub.f32 %v1179, %v1227
          %v1244 = vsub.f32 %v1180, %v1228
          %v1245 = vmul.f32 %v1229, 28.0
          %v1246 = vmul.f32 %v1230, 28.0
          %v1247 = vmul.f32 %v1231, 28.0
          %v1248 = vmul.f32 %v1232, 28.0
          %v1249 = vmul.f32 %v1233, 28.0
          %v1250 = vmul.f32 %v1234, 28.0
          %v1251 = vmul.f32 %v1235, 28.0
          %v1252 = vmul.f32 %v1236, 28.0
          %v1253 = vmul.f32 %v1237, 28.0
          %v1254 = vmul.f32 %v1238, 28.0
          %v1255 = vmul.f32 %v1239, 28.0
          %v1256 = vmul.f32 %v1240, 28.0
          %v1257 = vmul.f32 %v1241, 28.0
          %v1258 = vmul.f32 %v1242, 28.0
          %v1259 = vmul.f32 %v1243, 28.0
          %v1260 = vmul.f32 %v1244, 28.0
          %v1261 = vadd.f32 %v1117, %v1245
          %v1262 = vadd.f32 %v1118, %v1246
          %v1263 = vadd.f32 %v1119, %v1247
          %v1264 = vadd.f32 %v1120, %v1248
          %v1265 = vadd.f32 %v1121, %v1249
          %v1266 = vadd.f32 %v1122, %v1250
          %v1267 = vadd.f32 %v1123, %v1251
          %v1268 = vadd.f32 %v1124, %v1252
          %v1269 = vadd.f32 %v1125, %v1253
          %v1270 = vadd.f32 %v1126, %v1254
          %v1271 = vadd.f32 %v1127, %v1255
          %v1272 = vadd.f32 %v1128, %v1256
          %v1273 = vadd.f32 %v1129, %v1257
          %v1274 = vadd.f32 %v1130, %v1258
          %v1275 = vadd.f32 %v1131, %v1259
          %v1276 = vadd.f32 %v1132, %v1260
          %v1277 = vld [vmem:[#allocation12] sm:$0xff]
          %v1278 = vld [vmem:[#allocation12 + $0x8] sm:$0xff]
          %v1279 = vld [vmem:[#allocation12 + $0x10] sm:$0xff]
          %v1280 = vld [vmem:[#allocation12 + $0x18] sm:$0xff]
          %v1281 = vld [vmem:[#allocation12 + $0x20] sm:$0xff]
          %v1282 = vld [vmem:[#allocation12 + $0x28] sm:$0xff]
          %v1283 = vld [vmem:[#allocation12 + $0x30] sm:$0xff]
          %v1284 = vld [vmem:[#allocation12 + $0x38] sm:$0xff]
          %v1285 = vld [vmem:[#allocation12 + $0x40] sm:$0xff]
          %v1286 = vld [vmem:[#allocation12 + $0x48] sm:$0xff]
          %v1287 = vld [vmem:[#allocation12 + $0x50] sm:$0xff]
          %v1288 = vld [vmem:[#allocation12 + $0x58] sm:$0xff]
          %v1289 = vld [vmem:[#allocation12 + $0x60] sm:$0xff]
          %v1290 = vld [vmem:[#allocation12 + $0x68] sm:$0xff]
          %v1291 = vld [vmem:[#allocation12 + $0x70] sm:$0xff]
          %v1292 = vld [vmem:[#allocation12 + $0x78] sm:$0xff]
          %v1293 = vmul.f32 %v1277, 0.01
          %v1294 = vmul.f32 %v1278, 0.01
          %v1295 = vmul.f32 %v1279, 0.01
          %v1296 = vmul.f32 %v1280, 0.01
          %v1297 = vmul.f32 %v1281, 0.01
          %v1298 = vmul.f32 %v1282, 0.01
          %v1299 = vmul.f32 %v1283, 0.01
          %v1300 = vmul.f32 %v1284, 0.01
          %v1301 = vmul.f32 %v1285, 0.01
          %v1302 = vmul.f32 %v1286, 0.01
          %v1303 = vmul.f32 %v1287, 0.01
          %v1304 = vmul.f32 %v1288, 0.01
          %v1305 = vmul.f32 %v1289, 0.01
          %v1306 = vmul.f32 %v1290, 0.01
          %v1307 = vmul.f32 %v1291, 0.01
          %v1308 = vmul.f32 %v1292, 0.01
          %v1309 = vmul.f32 %v1261, 0.035357144
          %v1310 = vmul.f32 %v1262, 0.035357144
          %v1311 = vmul.f32 %v1263, 0.035357144
          %v1312 = vmul.f32 %v1264, 0.035357144
          %v1313 = vmul.f32 %v1265, 0.035357144
          %v1314 = vmul.f32 %v1266, 0.035357144
          %v1315 = vmul.f32 %v1267, 0.035357144
          %v1316 = vmul.f32 %v1268, 0.035357144
          %v1317 = vmul.f32 %v1269, 0.035357144
          %v1318 = vmul.f32 %v1270, 0.035357144
          %v1319 = vmul.f32 %v1271, 0.035357144
          %v1320 = vmul.f32 %v1272, 0.035357144
          %v1321 = vmul.f32 %v1273, 0.035357144
          %v1322 = vmul.f32 %v1274, 0.035357144
          %v1323 = vmul.f32 %v1275, 0.035357144
          %v1324 = vmul.f32 %v1276, 0.035357144
          %v1325 = vadd.f32 %v1293, %v1309
          %v1326 = vadd.f32 %v1294, %v1310
          %v1327 = vadd.f32 %v1295, %v1311
          %v1328 = vadd.f32 %v1296, %v1312
          %v1329 = vadd.f32 %v1297, %v1313
          %v1330 = vadd.f32 %v1298, %v1314
          %v1331 = vadd.f32 %v1299, %v1315
          %v1332 = vadd.f32 %v1300, %v1316
          %v1333 = vadd.f32 %v1301, %v1317
          %v1334 = vadd.f32 %v1302, %v1318
          %v1335 = vadd.f32 %v1303, %v1319
          %v1336 = vadd.f32 %v1304, %v1320
          %v1337 = vadd.f32 %v1305, %v1321
          %v1338 = vadd.f32 %v1306, %v1322
          %v1339 = vadd.f32 %v1307, %v1323
          %v1340 = vadd.f32 %v1308, %v1324
          %1341 = vst [vmem:[#allocation18] sm:$0xff] %v1325
          %1342 = vst [vmem:[#allocation18 + $0x8] sm:$0xff] %v1326
          %1343 = vst [vmem:[#allocation18 + $0x10] sm:$0xff] %v1327
          %1344 = vst [vmem:[#allocation18 + $0x18] sm:$0xff] %v1328
          %1345 = vst [vmem:[#allocation18 + $0x20] sm:$0xff] %v1329
          %1346 = vst [vmem:[#allocation18 + $0x28] sm:$0xff] %v1330
          %1347 = vst [vmem:[#allocation18 + $0x30] sm:$0xff] %v1331
          %1348 = vst [vmem:[#allocation18 + $0x38] sm:$0xff] %v1332
          %1349 = vst [vmem:[#allocation18 + $0x40] sm:$0xff] %v1333
          %1350 = vst [vmem:[#allocation18 + $0x48] sm:$0xff] %v1334
          %1351 = vst [vmem:[#allocation18 + $0x50] sm:$0xff] %v1335
          %1352 = vst [vmem:[#allocation18 + $0x58] sm:$0xff] %v1336
          %1353 = vst [vmem:[#allocation18 + $0x60] sm:$0xff] %v1337
          %1354 = vst [vmem:[#allocation18 + $0x68] sm:$0xff] %v1338
          %1355 = vst [vmem:[#allocation18 + $0x70] sm:$0xff] %v1339
          %1356 = vst [vmem:[#allocation18 + $0x78] sm:$0xff] %v1340
        $region68: #{tpu_custom_call.1} parent=43 // pred_fallthru
          _
        // Predicated region
        $region69: #{tpu_custom_call.1} parent=43 // pred_check
          %p1357 = pneg %p176
        $region70: #{tpu_custom_call.1} parent=43 // pred_check_branch
          %1359 = sbr.rel (%p1357) target = $region72
        $region71: #{tpu_custom_call.1} parent=43 // pred_region
          %1361 = vsyncadd [#allocation8], 0
          %s1363 = sshll.u32 [#allocation14], 4
          %s1364 = int_to_ptr.vmem [resolvable:$true] %s1363
          %s1365 = sshll.u32 %s6, 4
          %s1366 = int_to_ptr.hbm [resolvable:$true] %s1365
          %1368 = dma.vmem_to_hbm [thread:$0]  %s1364, 16, %s1366, [#allocation8]
        $region72: #{tpu_custom_call.1} parent=43 // pred_fallthru
          _
        // Predicated region
        $region73: #{tpu_custom_call.1} parent=43 // pred_check
          %p1369 = pneg %p197
        $region74: #{tpu_custom_call.1} parent=43 // pred_check_branch
          %1371 = sbr.rel (%p1369) target = $region76
        $region75: #{tpu_custom_call.1} parent=43 // pred_region
          %1373 = vsyncadd [#allocation16], 0
          %s1374 = sshll.u32 [#allocation15], 4
          %s1375 = int_to_ptr.vmem [resolvable:$true] %s1374
          %s1376 = sshll.u32 %s7, 4
          %s1377 = int_to_ptr.hbm [resolvable:$true] %s1376
          %1382 = dma.vmem_to_hbm [thread:$0]  %s1375, 2048, %s1377, [#allocation16], 128, 128, 8
        $region76: #{tpu_custom_call.1} parent=43 // pred_fallthru
          _
        // Predicated region
        $region77: #{tpu_custom_call.1} parent=43 // pred_check
          %p1383 = pneg %p218
        $region78: #{tpu_custom_call.1} parent=43 // pred_check_branch
          %1385 = sbr.rel (%p1383) target = $region80
        $region79: #{tpu_custom_call.1} parent=43 // pred_region
          %1387 = vsyncadd [#allocation16], 0
          %s1389 = sshll.u32 [#allocation17], 4
          %s1390 = int_to_ptr.vmem [resolvable:$true] %s1389
          %s1391 = sshll.u32 %s8, 4
          %s1392 = int_to_ptr.hbm [resolvable:$true] %s1391
          %1394 = dma.vmem_to_hbm [thread:$0]  %s1390, 16, %s1392, [#allocation16]
        $region80: #{tpu_custom_call.1} parent=43 // pred_fallthru
          _
        // Predicated region
        $region81: #{tpu_custom_call.1} parent=43 // pred_check
          %p1395 = pneg %p239
        $region82: #{tpu_custom_call.1} parent=43 // pred_check_branch
          %1397 = sbr.rel (%p1395) target = $region84
        $region83: #{tpu_custom_call.1} parent=43 // pred_region
          %1399 = vsyncadd [#allocation19], 0
          %s1400 = sshll.u32 [#allocation18], 4
          %s1401 = int_to_ptr.vmem [resolvable:$true] %s1400
          %s1402 = sshll.u32 %s9, 4
          %s1403 = int_to_ptr.hbm [resolvable:$true] %s1402
          %1408 = dma.vmem_to_hbm [thread:$0]  %s1401, 2048, %s1403, [#allocation19], 128, 128, 8
        $region84: #{tpu_custom_call.1} parent=43 // pred_fallthru
          _
        // Predicated region
        $region85: #{tpu_custom_call.1} parent=43 // pred_check
          %p1409 = pneg %p176
        $region86: #{tpu_custom_call.1} parent=43 // pred_check_branch
          %1411 = sbr.rel (%p1409) target = $region88
        $region87: #{tpu_custom_call.1} parent=43 // pred_region
          %1413 = dma.done [#allocation8], 16
        $region88: #{tpu_custom_call.1} parent=43 // pred_fallthru
          _
        // Predicated region
        $region89: #{tpu_custom_call.1} parent=43 // pred_check
          %p1414 = pneg %p197
        $region90: #{tpu_custom_call.1} parent=43 // pred_check_branch
          %1416 = sbr.rel (%p1414) target = $region92
        $region91: #{tpu_custom_call.1} parent=43 // pred_region
          %1418 = dma.done [#allocation16], 2048
        $region92: #{tpu_custom_call.1} parent=43 // pred_fallthru
          _
        // Predicated region
        $region93: #{tpu_custom_call.1} parent=43 // pred_check
          %p1419 = pneg %p218
        $region94: #{tpu_custom_call.1} parent=43 // pred_check_branch
          %1421 = sbr.rel (%p1419) target = $region96
        $region95: #{tpu_custom_call.1} parent=43 // pred_region
          %1423 = dma.done [#allocation16], 16
        $region96: #{tpu_custom_call.1} parent=43 // pred_fallthru
          _
        // Predicated region
        $region97: #{tpu_custom_call.1} parent=43 // pred_check
          %p1424 = pneg %p239
        $region98: #{tpu_custom_call.1} parent=43 // pred_check_branch
          %1426 = sbr.rel (%p1424) target = $region100
        $region99: #{tpu_custom_call.1} parent=43 // pred_region
          %1428 = dma.done [#allocation19], 2048
        $region100: #{tpu_custom_call.1} parent=43 // pred_fallthru
          _
      $region44: #{tpu_custom_call.1} parent=5 // pred_fallthru
        _
      %p1429 = scmp.le.s32.totalorder 2, %s22
      // Predicated region
      $region101: #{tpu_custom_call.1} parent=5 // pred_check
        %p1430 = pneg %p1429
      $region102: #{tpu_custom_call.1} parent=5 // pred_check_branch
        %1432 = sbr.rel (%p1430) target = $region104
      $region103: #{tpu_custom_call.1} parent=5 // pred_region
        %s1433 = ssub.s32 %s22, 2
      $region104: #{tpu_custom_call.1} parent=5 // pred_fallthru
        _
    $region6: #{tpu_custom_call.1} parent=1 // loop_footer
      %s26 = sadd.s32 1, %s22
    $region7: #{tpu_custom_call.1} parent=1 // loop_footer_branch
      %21 = sbr.rel target = $region3
    $region8: #{tpu_custom_call.1} parent=1 // loop_exit
      _
    %1434 = vsyncpa [#allocation7], 1
    %s1435 = scalar_lea.sflag [#allocation7], 1
    %1436 = vsyncpa %s1435, 1
    %1437 = vsyncpa [#allocation10], 1
    %1438 = vsyncpa [#allocation13], 1
    %1439 = vsyncpa [#allocation8], 1
    %s1440 = scalar_lea.sflag [#allocation8], 1
    %1441 = vsyncpa %s1440, 1
    %1442 = vsyncpa [#allocation16], 1
    %1443 = vsyncpa [#allocation19], 1

</llo_original>
